<compile_context>
chip_gen: v5e
topology: v5e:2x2
jax: 0.10.0
libtpu: 0.0.40
codegen_flags: <defaults>
</compile_context>

<pallas_src>
import functools

import jax
import jax.numpy as jnp
from jax.experimental import pallas as pl
from jax.experimental.pallas import tpu as pltpu

_K = 3        # conv kernel size
_HALO = 4     # 4 fused k=3 layers -> 4 rows of halo per side of a time tile


def _round_up(x, m):
    return ((x + m - 1) // m) * m


# ----------------------------------------------------------------------------
# Fused: 4x (Conv1d k=3 'same' + bias + ReLU)  +  global average pool.
# ----------------------------------------------------------------------------
def _fused_conv_pool_kernel(xp_hbm, w1, b1, w2, b2, w3, b3, w4, b4,
                            pooled_ref, x_vmem, sem, *, t_tile, seq_len):
    b = pl.program_id(0)
    t = pl.program_id(1)
    nt = pl.num_programs(1)
    win = t_tile + 2 * _HALO
    t0 = pl.multiple_of(t * t_tile, 8)
    slot = t & 1

    def issue(row0, s):
        pltpu.make_async_copy(
            xp_hbm.at[b, pl.ds(row0, win), :], x_vmem.at[s], sem.at[s]).start()

    # Prime the double buffer on the first tile of every batch row
    # (batch-local so this stays correct under megacore batch sharding).
    @pl.when(t == 0)
    def _():
        issue(t0, slot)

    # Prefetch the next tile of this batch row into the other slot while we
    # compute the current one.
    @pl.when(t + 1 < nt)
    def _():
        issue(pl.multiple_of((t + 1) * t_tile, 8), 1 - slot)

    # Wait for the current tile's DMA.
    pltpu.make_async_copy(
        xp_hbm.at[b, pl.ds(t0, win), :], x_vmem.at[slot], sem.at[slot]).wait()

    # Single validity vector covering the widest (layer-1) output window:
    # rows at global positions [t0-3, t0+t_tile+3).  Out-of-range rows (left
    # pad, right pad, tail rounding) are multiplied to zero after each layer,
    # which both implements 'same' padding for the next layer and keeps
    # padded rows out of the global average pool.
    m_rows = t_tile + 2 * (_HALO - 1)
    pos = (t0 - (_HALO - 1)) + jax.lax.broadcasted_iota(
        jnp.int32, (m_rows, 1), 0)
    valid = ((pos >= 0) & (pos < seq_len)).astype(jnp.float32)

    def conv3_relu(xin, w_ref, b_ref, rows_out, off):
        # xin: (rows_out + 2, Cin) bf16; w_ref: (3*Cin, Cout) bf16;
        # b_ref: (1, Cout) f32.  The three taps are concatenated along lanes
        # so the whole layer is ONE MXU matmul with K = 3*Cin (fills the
        # 256-deep MXU on v6e/v7x), bf16 operands / f32 accumulation.
        lhs = jnp.concatenate(
            [xin[0:rows_out, :],
             xin[1:rows_out + 1, :],
             xin[2:rows_out + 2, :]], axis=-1)
        acc = jnp.dot(lhs, w_ref[...], preferred_element_type=jnp.float32)
        y = jnp.maximum(acc + b_ref[...], 0.0)
        return y * valid[off:off + rows_out, :]

    x0 = x_vmem[slot]                                             # bf16
    h = conv3_relu(x0, w1, b1, t_tile + 6, 0)
    h = conv3_relu(h.astype(jnp.bfloat16), w2, b2, t_tile + 4, 1)
    h = conv3_relu(h.astype(jnp.bfloat16), w3, b3, t_tile + 2, 2)
    h = conv3_relu(h.astype(jnp.bfloat16), w4, b4, t_tile, 3)     # (t_tile,512) f32

    @pl.when(t == 0)
    def _():
        pooled_ref[...] = jnp.zeros_like(pooled_ref)

    # Keep the pool reduce in f32 on the VPU (precision of the running mean).
    pooled_ref[...] += jnp.sum(h, axis=0, keepdims=True)[None]

    @pl.when(t == nt - 1)
    def _():
        pooled_ref[...] *= jnp.float32(1.0 / seq_len)


def fused_conv_pool(xp, conv_params, *, seq_len, t_tile):
    # xp: (B, 2*_HALO + NT*t_tile, Cin_pad) bf16 (halo + tail padded, lane padded)
    B, t_padded_total, cin_pad = xp.shape
    nt = (t_padded_total - 2 * _HALO) // t_tile
    c_last = conv_params[-1][0].shape[-1]

    kernel = functools.partial(_fused_conv_pool_kernel,
                               t_tile=t_tile, seq_len=seq_len)

    in_specs = [pl.BlockSpec(memory_space=pl.ANY)]   # raw input stays in HBM
    flat = [xp]
    for w, bias in conv_params:                       # ~1.2 MB bf16 total
        in_specs.append(pl.BlockSpec(w.shape, lambda i, j: (0, 0)))
        in_specs.append(pl.BlockSpec(bias.shape, lambda i, j: (0, 0)))
        flat += [w, bias]

    return pl.pallas_call(
        kernel,
        out_shape=jax.ShapeDtypeStruct((B, 1, c_last), jnp.float32),
        grid=(B, nt),
        in_specs=in_specs,
        out_specs=pl.BlockSpec((1, 1, c_last), lambda i, j: (i, 0, 0)),
        scratch_shapes=[
            pltpu.VMEM((2, t_tile + 2 * _HALO, cin_pad), jnp.bfloat16),
            pltpu.SemaphoreType.DMA((2,)),
        ],
        compiler_params=pltpu.CompilerParams(
            dimension_semantics=("parallel", "arbitrary")),
    )(*flat)


# ----------------------------------------------------------------------------
# Head: Linear(512,1024) + ReLU + Linear(1024,d_model) + Linear(d_model,ncls)
# (operates on the already-pooled (B, 512) tensor -> tiny, single block call)
# ----------------------------------------------------------------------------
def _head_kernel(p_ref, w1, b1, w2, b2, w3, b3, o_ref):
    pooled = p_ref[...].astype(jnp.bfloat16)                       # (B, 512)
    h = jnp.dot(pooled, w1[...], preferred_element_type=jnp.float32) + b1[...]
    h = jnp.maximum(h, 0.0).astype(jnp.bfloat16)
    h2 = jnp.dot(h, w2[...], preferred_element_type=jnp.float32) + b2[...]
    out = jnp.dot(h2.astype(jnp.bfloat16), w3[...],
                  preferred_element_type=jnp.float32) + b3[...]
    o_ref[...] = out.astype(o_ref.dtype)


def head(pooled, ff1, ff2, out_p):
    # Everything here is tiny (~1.3 MB bf16 weights + (B,512) activations),
    # so whole-array VMEM blocks with no grid are fine after the pool fusion.
    B = pooled.shape[0]
    n_out = out_p[0].shape[1]
    return pl.pallas_call(
        _head_kernel,
        out_shape=jax.ShapeDtypeStruct((B, n_out), jnp.float32),
    )(pooled, ff1[0], ff1[1], ff2[0], ff2[1], out_p[0], out_p[1])


# ----------------------------------------------------------------------------
# Parameter prep (bf16 cast + lane padding + tap-concatenated conv weights)
# ----------------------------------------------------------------------------
def _prep_conv_params(params, n_mels, cin_pad):
    out = []
    for li, (w, bias) in enumerate(params["conv"]):
        if li == 0:
            w = jnp.pad(w, ((0, 0), (0, cin_pad - n_mels), (0, 0)))
        k, cin, cout = w.shape
        # Stack taps along the contraction dim: matches the in-kernel lane
        # concat [tap0 | tap1 | tap2] of the shifted activation windows.
        w2d = w.reshape(k * cin, cout)
        out.append((w2d.astype(jnp.bfloat16),
                    bias.reshape(1, -1).astype(jnp.float32)))
    return out


def _prep_head_params(params):
    w1, b1 = params["ff1"]                  # (512,1024), (1024,)
    w2, b2 = params["ff2"]                  # (1024,d_model), (d_model,)
    w3, b3 = params["out"]                  # (d_model,n_classes), (n_classes,)
    d_model, n_classes = w3.shape
    d_pad = _round_up(d_model, 128)
    n_pad = _round_up(n_classes, 128)
    w2p = jnp.pad(w2, ((0, 0), (0, d_pad - d_model)))
    b2p = jnp.pad(b2, (0, d_pad - d_model))
    w3p = jnp.pad(w3, ((0, d_pad - d_model), (0, n_pad - n_classes)))
    b3p = jnp.pad(b3, (0, n_pad - n_classes))
    bf = jnp.bfloat16
    return ((w1.astype(bf), b1.reshape(1, -1).astype(jnp.float32)),
            (w2p.astype(bf), b2p.reshape(1, -1).astype(jnp.float32)),
            (w3p.astype(bf), b3p.reshape(1, -1).astype(jnp.float32)))


# ----------------------------------------------------------------------------
# Full model
# ----------------------------------------------------------------------------
def conv1d_model(x, params, *, t_tile=512):
    # x: (B, T, n_mels) -- matches the PyTorch forward input before transpose(1,2)
    B, T, n_mels = x.shape
    assert n_mels <= 256, "n_mels too high for this model"
    n_classes = params["out"][0].shape[1]

    cin_pad = _round_up(n_mels, 128)
    tt = min(t_tile, _round_up(T, 8))        # rows per time tile (multiple of 8)
    nt = pl.cdiv(T, tt)
    t_padded = nt * tt

    # Single cheap pad of the raw input: halo rows front/back (+ tail rounding)
    # and lane-pad the mel channels to a multiple of 128; cast to bf16.
    xp = jnp.pad(x, ((0, 0),
                     (_HALO, _HALO + t_padded - T),
                     (0, cin_pad - n_mels))).astype(jnp.bfloat16)

    conv_params = _prep_conv_params(params, n_mels, cin_pad)
    pooled = fused_conv_pool(xp, conv_params, seq_len=T, t_tile=tt)   # (B,1,512)
    pooled = pooled.reshape(B, conv_params[-1][0].shape[-1])          # (B,512) f32

    ff1, ff2, out_p = _prep_head_params(params)
    logits = head(pooled, ff1, ff2, out_p)                            # (B, n_pad)
    return logits[:, :n_classes]


def init_params(key, n_mels, n_classes, d_model):
    conv_dims = [(n_mels, 128), (128, 128), (128, 256), (256, 512)]
    params = {"conv": []}
    keys = jax.random.split(key, 16)
    ki = 0
    for cin, cout in conv_dims:
        w = jax.random.normal(keys[ki], (_K, cin, cout), jnp.float32) * 0.05
        b = jax.random.normal(keys[ki + 1], (cout,), jnp.float32) * 0.05
        params["conv"].append((w, b))
        ki += 2

    def lin(cin, cout):
        nonlocal ki
        w = jax.random.normal(keys[ki], (cin, cout), jnp.float32) * 0.05
        b = jax.random.normal(keys[ki + 1], (cout,), jnp.float32) * 0.05
        ki += 2
        return w, b

    params["ff1"] = lin(512, 1024)
    params["ff2"] = lin(1024, d_model)
    params["out"] = lin(d_model, n_classes)
    return params


# ----------------------------------------------------------------------------
# Pure-JAX reference (mirrors the kernel's bf16-operand / f32-accumulate recipe)
# ----------------------------------------------------------------------------
def conv1d_model_ref(x, params):
    bf, f32 = jnp.bfloat16, jnp.float32
    T = x.shape[1]
    h = x.astype(f32)
    for w, bias in params["conv"]:
        xin = jnp.pad(h.astype(bf).astype(f32), ((0, 0), (1, 1), (0, 0)))
        wb = w.astype(bf).astype(f32)
        acc = sum(jnp.einsum("btc,cd->btd", xin[:, k:k + T, :], wb[k])
                  for k in range(_K))
        h = jnp.maximum(acc + bias.astype(f32), 0.0)
    pooled = jnp.mean(h, axis=1)

    def lin(v, w, bias):
        return (jnp.dot(v.astype(bf).astype(f32), w.astype(bf).astype(f32))
                + bias.astype(f32))

    w1, b1 = params["ff1"]
    w2, b2 = params["ff2"]
    w3, b3 = params["out"]
    hf = jnp.maximum(lin(pooled, w1, b1), 0.0)
    h2 = lin(hf, w2, b2)
    return lin(h2, w3, b3)


if __name__ == "__main__":
    B, T, n_mels = 2, 20, 64
    d_model, n_classes = 32, 8

    key = jax.random.PRNGKey(0)
    kx, kp = jax.random.split(key)
    x = jax.random.normal(kx, (B, T, n_mels), jnp.float32)
    params = init_params(kp, n_mels, n_classes, d_model)

    # t_tile=8 at this tiny T exercises the multi-tile / double-buffered DMA
    # path plus tail masking (T=20 is not a multiple of the tile).
    out = conv1d_model(x, params, t_tile=8)
    out = jax.block_until_ready(out)

    ref = conv1d_model_ref(x, params)
    assert out.shape == (B, n_classes)
    assert jnp.allclose(out, ref, atol=2e-3, rtol=2e-3), "mismatch vs reference"

    print("KERNEL_OK")
</pallas_src>

<mosaic_0001>
module attributes {stable_mosaic.version = 11 : i64} {
  func.func @_fused_conv_pool_kernel(%arg0: i32, %arg1: i32, %arg2: memref<2x32x128xbf16, #tpu.memory_space<any>>, %arg3: memref<384x128xbf16, #tpu.memory_space<vmem>>, %arg4: memref<1x128xf32, #tpu.memory_space<vmem>>, %arg5: memref<384x128xbf16, #tpu.memory_space<vmem>>, %arg6: memref<1x128xf32, #tpu.memory_space<vmem>>, %arg7: memref<384x256xbf16, #tpu.memory_space<vmem>>, %arg8: memref<1x256xf32, #tpu.memory_space<vmem>>, %arg9: memref<768x512xbf16, #tpu.memory_space<vmem>>, %arg10: memref<1x512xf32, #tpu.memory_space<vmem>>, %arg11: memref<1x1x512xf32, #tpu.memory_space<vmem>>, %arg12: memref<2x16x128xbf16, #tpu.memory_space<vmem>>, %arg13: memref<2x!tpu.dma_semaphore, #tpu.memory_space<semaphore_mem>>) attributes {dimension_semantics = [#tpu.dimension_semantics<parallel>, #tpu.dimension_semantics<arbitrary>], iteration_bounds = array<i64: 2, 3>, scalar_prefetch = 0 : i64, scratch_operands = 2 : i64, tpu.core_type = #tpu.core_type<tc>, window_params = [{}, {pipeline_mode = #tpu.pipeline_mode<synchronous>, transform_indices = @transform_1, window_bounds = array<i64: 384, 128>}, {pipeline_mode = #tpu.pipeline_mode<synchronous>, transform_indices = @transform_2, window_bounds = array<i64: 1, 128>}, {pipeline_mode = #tpu.pipeline_mode<synchronous>, transform_indices = @transform_3, window_bounds = array<i64: 384, 128>}, {pipeline_mode = #tpu.pipeline_mode<synchronous>, transform_indices = @transform_4, window_bounds = array<i64: 1, 128>}, {pipeline_mode = #tpu.pipeline_mode<synchronous>, transform_indices = @transform_5, window_bounds = array<i64: 384, 256>}, {pipeline_mode = #tpu.pipeline_mode<synchronous>, transform_indices = @transform_6, window_bounds = array<i64: 1, 256>}, {pipeline_mode = #tpu.pipeline_mode<synchronous>, transform_indices = @transform_7, window_bounds = array<i64: 768, 512>}, {pipeline_mode = #tpu.pipeline_mode<synchronous>, transform_indices = @transform_8, window_bounds = array<i64: 1, 512>}, {transform_indices = @transform_9, window_bounds = array<i64: 1, 1, 512>}]} {
    %c8_i32 = arith.constant 8 : i32
    %0 = arith.muli %arg1, %c8_i32 : i32
    %1 = tpu.assume_multiple %0, 8 : i32
    %c1_i32 = arith.constant 1 : i32
    %2 = arith.andi %arg1, %c1_i32 : i32
    %c0_i32 = arith.constant 0 : i32
    %3 = arith.cmpi eq, %arg1, %c0_i32 : i32
    %4 = arith.extui %3 : i1 to i32
    %c0_i32_0 = arith.constant 0 : i32
    %5 = arith.cmpi ne, %4, %c0_i32_0 : i32
    scf.if %5 {
      %c0_i32_42 = arith.constant 0 : i32
      %100 = tpu.memref_slice %arg2[%arg0, %1, %c0_i32_42] : memref<2x32x128xbf16, #tpu.memory_space<any>> -> memref<1x16x128xbf16, #tpu.memory_space<any>>
      %101 = tpu.memref_squeeze %100 : memref<1x16x128xbf16, #tpu.memory_space<any>> -> memref<16x128xbf16, #tpu.memory_space<any>>
      %c0_i32_43 = arith.constant 0 : i32
      %c0_i32_44 = arith.constant 0 : i32
      %102 = tpu.memref_slice %arg12[%2, %c0_i32_43, %c0_i32_44] : memref<2x16x128xbf16, #tpu.memory_space<vmem>> -> memref<1x16x128xbf16, #tpu.memory_space<vmem>>
      %103 = tpu.memref_squeeze %102 : memref<1x16x128xbf16, #tpu.memory_space<vmem>> -> memref<16x128xbf16, #tpu.memory_space<vmem>>
      %104 = tpu.memref_slice %arg13[%2] : memref<2x!tpu.dma_semaphore, #tpu.memory_space<semaphore_mem>> -> memref<1x!tpu.dma_semaphore, #tpu.memory_space<semaphore_mem>>
      %105 = tpu.memref_squeeze %104 : memref<1x!tpu.dma_semaphore, #tpu.memory_space<semaphore_mem>> -> memref<!tpu.dma_semaphore, #tpu.memory_space<semaphore_mem>>
      tpu.enqueue_dma source(%101 : memref<16x128xbf16, #tpu.memory_space<any>>) target(%103 : memref<16x128xbf16, #tpu.memory_space<vmem>>) target_semaphore(%105 : memref<!tpu.dma_semaphore, #tpu.memory_space<semaphore_mem>>)
    } else {
    }
    %c1_i32_1 = arith.constant 1 : i32
    %6 = arith.addi %arg1, %c1_i32_1 : i32
    %c3_i32 = arith.constant 3 : i32
    %7 = arith.cmpi slt, %6, %c3_i32 : i32
    %8 = arith.extui %7 : i1 to i32
    %c0_i32_2 = arith.constant 0 : i32
    %9 = arith.cmpi ne, %8, %c0_i32_2 : i32
    scf.if %9 {
      %c1_i32_42 = arith.constant 1 : i32
      %100 = arith.addi %arg1, %c1_i32_42 : i32
      %c8_i32_43 = arith.constant 8 : i32
      %101 = arith.muli %100, %c8_i32_43 : i32
      %102 = tpu.assume_multiple %101, 8 : i32
      %c1_i32_44 = arith.constant 1 : i32
      %103 = arith.subi %c1_i32_44, %2 : i32
      %c0_i32_45 = arith.constant 0 : i32
      %104 = tpu.memref_slice %arg2[%arg0, %102, %c0_i32_45] : memref<2x32x128xbf16, #tpu.memory_space<any>> -> memref<1x16x128xbf16, #tpu.memory_space<any>>
      %105 = tpu.memref_squeeze %104 : memref<1x16x128xbf16, #tpu.memory_space<any>> -> memref<16x128xbf16, #tpu.memory_space<any>>
      %c0_i32_46 = arith.constant 0 : i32
      %c0_i32_47 = arith.constant 0 : i32
      %106 = tpu.memref_slice %arg12[%103, %c0_i32_46, %c0_i32_47] : memref<2x16x128xbf16, #tpu.memory_space<vmem>> -> memref<1x16x128xbf16, #tpu.memory_space<vmem>>
      %107 = tpu.memref_squeeze %106 : memref<1x16x128xbf16, #tpu.memory_space<vmem>> -> memref<16x128xbf16, #tpu.memory_space<vmem>>
      %108 = tpu.memref_slice %arg13[%103] : memref<2x!tpu.dma_semaphore, #tpu.memory_space<semaphore_mem>> -> memref<1x!tpu.dma_semaphore, #tpu.memory_space<semaphore_mem>>
      %109 = tpu.memref_squeeze %108 : memref<1x!tpu.dma_semaphore, #tpu.memory_space<semaphore_mem>> -> memref<!tpu.dma_semaphore, #tpu.memory_space<semaphore_mem>>
      tpu.enqueue_dma source(%105 : memref<16x128xbf16, #tpu.memory_space<any>>) target(%107 : memref<16x128xbf16, #tpu.memory_space<vmem>>) target_semaphore(%109 : memref<!tpu.dma_semaphore, #tpu.memory_space<semaphore_mem>>)
    } else {
    }
    %c0_i32_3 = arith.constant 0 : i32
    %10 = tpu.memref_slice %arg2[%arg0, %1, %c0_i32_3] : memref<2x32x128xbf16, #tpu.memory_space<any>> -> memref<1x16x128xbf16, #tpu.memory_space<any>>
    %11 = tpu.memref_squeeze %10 : memref<1x16x128xbf16, #tpu.memory_space<any>> -> memref<16x128xbf16, #tpu.memory_space<any>>
    %c0_i32_4 = arith.constant 0 : i32
    %c0_i32_5 = arith.constant 0 : i32
    %12 = tpu.memref_slice %arg12[%2, %c0_i32_4, %c0_i32_5] : memref<2x16x128xbf16, #tpu.memory_space<vmem>> -> memref<1x16x128xbf16, #tpu.memory_space<vmem>>
    %13 = tpu.memref_squeeze %12 : memref<1x16x128xbf16, #tpu.memory_space<vmem>> -> memref<16x128xbf16, #tpu.memory_space<vmem>>
    %14 = tpu.memref_slice %arg13[%2] : memref<2x!tpu.dma_semaphore, #tpu.memory_space<semaphore_mem>> -> memref<1x!tpu.dma_semaphore, #tpu.memory_space<semaphore_mem>>
    %15 = tpu.memref_squeeze %14 : memref<1x!tpu.dma_semaphore, #tpu.memory_space<semaphore_mem>> -> memref<!tpu.dma_semaphore, #tpu.memory_space<semaphore_mem>>
    tpu.wait_dma2 semaphore(%15 : memref<!tpu.dma_semaphore, #tpu.memory_space<semaphore_mem>>) src(%11 : memref<16x128xbf16, #tpu.memory_space<any>>) dst(%13 : memref<16x128xbf16, #tpu.memory_space<vmem>>)
    %c3_i32_6 = arith.constant 3 : i32
    %16 = arith.subi %1, %c3_i32_6 : i32
    %17 = tpu.iota {dimensions = array<i32: 0>} : vector<14x1xi32>
    %18 = vector.broadcast %16 : i32 to vector<14x1xi32>
    %19 = arith.addi %18, %17 : vector<14x1xi32>
    %c0_i32_7 = arith.constant 0 : i32
    %20 = vector.broadcast %c0_i32_7 : i32 to vector<14x1xi32>
    %21 = arith.cmpi sge, %19, %20 : vector<14x1xi32>
    %c20_i32 = arith.constant 20 : i32
    %22 = vector.broadcast %c20_i32 : i32 to vector<14x1xi32>
    %23 = arith.cmpi slt, %19, %22 : vector<14x1xi32>
    %24 = arith.andi %21, %23 : vector<14x1xi1>
    %25 = arith.extui %24 : vector<14x1xi1> to vector<14x1xi32>
    %26 = arith.sitofp %25 : vector<14x1xi32> to vector<14x1xf32>
    %27 = arith.index_cast %2 : i32 to index
    %c0 = arith.constant 0 : index
    %c0_8 = arith.constant 0 : index
    %28 = vector.load %arg12[%27, %c0, %c0_8] : memref<2x16x128xbf16, #tpu.memory_space<vmem>>, vector<1x16x128xbf16>
    %29 = vector.shape_cast %28 : vector<1x16x128xbf16> to vector<16x128xbf16>
    %30 = vector.extract_strided_slice %29 {offsets = [0, 0], sizes = [14, 128], strides = [1, 1]} : vector<16x128xbf16> to vector<14x128xbf16>
    %31 = vector.extract_strided_slice %29 {offsets = [1, 0], sizes = [14, 128], strides = [1, 1]} : vector<16x128xbf16> to vector<14x128xbf16>
    %32 = vector.extract_strided_slice %29 {offsets = [2, 0], sizes = [14, 128], strides = [1, 1]} : vector<16x128xbf16> to vector<14x128xbf16>
    %33 = tpu.concatenate %30, %31, %32 in 1 : vector<14x128xbf16>, vector<14x128xbf16>, vector<14x128xbf16> -> vector<14x384xbf16>
    %c0_9 = arith.constant 0 : index
    %c0_10 = arith.constant 0 : index
    %34 = vector.load %arg3[%c0_9, %c0_10] : memref<384x128xbf16, #tpu.memory_space<vmem>>, vector<384x128xbf16>
    %cst = arith.constant dense<0.000000e+00> : vector<14x128xf32>
    %35 = tpu.matmul %33, %34, %cst {dimension_numbers = #tpu.dot_dimension_numbers<[1], [0], [0], [1], [0, 0, 1, 1], [], []>} : vector<14x384xbf16>, vector<384x128xbf16>, vector<14x128xf32> -> vector<14x128xf32>
    %c0_11 = arith.constant 0 : index
    %c0_12 = arith.constant 0 : index
    %36 = vector.load %arg4[%c0_11, %c0_12] : memref<1x128xf32, #tpu.memory_space<vmem>>, vector<1x128xf32>
    %37 = vector.broadcast %36 : vector<1x128xf32> to vector<14x128xf32>
    %38 = arith.addf %35, %37 : vector<14x128xf32>
    %cst_13 = arith.constant 0.000000e+00 : f32
    %39 = vector.broadcast %cst_13 : f32 to vector<14x128xf32>
    %40 = arith.maximumf %38, %39 : vector<14x128xf32>
    %41 = vector.broadcast %26 : vector<14x1xf32> to vector<14x128xf32>
    %42 = arith.mulf %40, %41 : vector<14x128xf32>
    %43 = arith.truncf %42 : vector<14x128xf32> to vector<14x128xbf16>
    %44 = vector.extract_strided_slice %43 {offsets = [0, 0], sizes = [12, 128], strides = [1, 1]} : vector<14x128xbf16> to vector<12x128xbf16>
    %45 = vector.extract_strided_slice %43 {offsets = [1, 0], sizes = [12, 128], strides = [1, 1]} : vector<14x128xbf16> to vector<12x128xbf16>
    %46 = vector.extract_strided_slice %43 {offsets = [2, 0], sizes = [12, 128], strides = [1, 1]} : vector<14x128xbf16> to vector<12x128xbf16>
    %47 = tpu.concatenate %44, %45, %46 in 1 : vector<12x128xbf16>, vector<12x128xbf16>, vector<12x128xbf16> -> vector<12x384xbf16>
    %c0_14 = arith.constant 0 : index
    %c0_15 = arith.constant 0 : index
    %48 = vector.load %arg5[%c0_14, %c0_15] : memref<384x128xbf16, #tpu.memory_space<vmem>>, vector<384x128xbf16>
    %cst_16 = arith.constant dense<0.000000e+00> : vector<12x128xf32>
    %49 = tpu.matmul %47, %48, %cst_16 {dimension_numbers = #tpu.dot_dimension_numbers<[1], [0], [0], [1], [0, 0, 1, 1], [], []>} : vector<12x384xbf16>, vector<384x128xbf16>, vector<12x128xf32> -> vector<12x128xf32>
    %c0_17 = arith.constant 0 : index
    %c0_18 = arith.constant 0 : index
    %50 = vector.load %arg6[%c0_17, %c0_18] : memref<1x128xf32, #tpu.memory_space<vmem>>, vector<1x128xf32>
    %51 = vector.broadcast %50 : vector<1x128xf32> to vector<12x128xf32>
    %52 = arith.addf %49, %51 : vector<12x128xf32>
    %cst_19 = arith.constant 0.000000e+00 : f32
    %53 = vector.broadcast %cst_19 : f32 to vector<12x128xf32>
    %54 = arith.maximumf %52, %53 : vector<12x128xf32>
    %55 = vector.extract_strided_slice %26 {offsets = [1, 0], sizes = [12, 1], strides = [1, 1]} : vector<14x1xf32> to vector<12x1xf32>
    %56 = vector.broadcast %55 : vector<12x1xf32> to vector<12x128xf32>
    %57 = arith.mulf %54, %56 : vector<12x128xf32>
    %58 = arith.truncf %57 : vector<12x128xf32> to vector<12x128xbf16>
    %59 = vector.extract_strided_slice %58 {offsets = [0, 0], sizes = [10, 128], strides = [1, 1]} : vector<12x128xbf16> to vector<10x128xbf16>
    %60 = vector.extract_strided_slice %58 {offsets = [1, 0], sizes = [10, 128], strides = [1, 1]} : vector<12x128xbf16> to vector<10x128xbf16>
    %61 = vector.extract_strided_slice %58 {offsets = [2, 0], sizes = [10, 128], strides = [1, 1]} : vector<12x128xbf16> to vector<10x128xbf16>
    %62 = tpu.concatenate %59, %60, %61 in 1 : vector<10x128xbf16>, vector<10x128xbf16>, vector<10x128xbf16> -> vector<10x384xbf16>
    %c0_20 = arith.constant 0 : index
    %c0_21 = arith.constant 0 : index
    %63 = vector.load %arg7[%c0_20, %c0_21] : memref<384x256xbf16, #tpu.memory_space<vmem>>, vector<384x256xbf16>
    %cst_22 = arith.constant dense<0.000000e+00> : vector<10x256xf32>
    %64 = tpu.matmul %62, %63, %cst_22 {dimension_numbers = #tpu.dot_dimension_numbers<[1], [0], [0], [1], [0, 0, 1, 1], [], []>} : vector<10x384xbf16>, vector<384x256xbf16>, vector<10x256xf32> -> vector<10x256xf32>
    %c0_23 = arith.constant 0 : index
    %c0_24 = arith.constant 0 : index
    %65 = vector.load %arg8[%c0_23, %c0_24] : memref<1x256xf32, #tpu.memory_space<vmem>>, vector<1x256xf32>
    %66 = vector.broadcast %65 : vector<1x256xf32> to vector<10x256xf32>
    %67 = arith.addf %64, %66 : vector<10x256xf32>
    %cst_25 = arith.constant 0.000000e+00 : f32
    %68 = vector.broadcast %cst_25 : f32 to vector<10x256xf32>
    %69 = arith.maximumf %67, %68 : vector<10x256xf32>
    %70 = vector.extract_strided_slice %26 {offsets = [2, 0], sizes = [10, 1], strides = [1, 1]} : vector<14x1xf32> to vector<10x1xf32>
    %71 = vector.broadcast %70 : vector<10x1xf32> to vector<10x256xf32>
    %72 = arith.mulf %69, %71 : vector<10x256xf32>
    %73 = arith.truncf %72 : vector<10x256xf32> to vector<10x256xbf16>
    %74 = vector.extract_strided_slice %73 {offsets = [0, 0], sizes = [8, 256], strides = [1, 1]} : vector<10x256xbf16> to vector<8x256xbf16>
    %75 = vector.extract_strided_slice %73 {offsets = [1, 0], sizes = [8, 256], strides = [1, 1]} : vector<10x256xbf16> to vector<8x256xbf16>
    %76 = vector.extract_strided_slice %73 {offsets = [2, 0], sizes = [8, 256], strides = [1, 1]} : vector<10x256xbf16> to vector<8x256xbf16>
    %77 = tpu.concatenate %74, %75, %76 in 1 : vector<8x256xbf16>, vector<8x256xbf16>, vector<8x256xbf16> -> vector<8x768xbf16>
    %c0_26 = arith.constant 0 : index
    %c0_27 = arith.constant 0 : index
    %78 = vector.load %arg9[%c0_26, %c0_27] : memref<768x512xbf16, #tpu.memory_space<vmem>>, vector<768x512xbf16>
    %cst_28 = arith.constant dense<0.000000e+00> : vector<8x512xf32>
    %79 = tpu.matmul %77, %78, %cst_28 {dimension_numbers = #tpu.dot_dimension_numbers<[1], [0], [0], [1], [0, 0, 1, 1], [], []>} : vector<8x768xbf16>, vector<768x512xbf16>, vector<8x512xf32> -> vector<8x512xf32>
    %c0_29 = arith.constant 0 : index
    %c0_30 = arith.constant 0 : index
    %80 = vector.load %arg10[%c0_29, %c0_30] : memref<1x512xf32, #tpu.memory_space<vmem>>, vector<1x512xf32>
    %81 = vector.broadcast %80 : vector<1x512xf32> to vector<8x512xf32>
    %82 = arith.addf %79, %81 : vector<8x512xf32>
    %cst_31 = arith.constant 0.000000e+00 : f32
    %83 = vector.broadcast %cst_31 : f32 to vector<8x512xf32>
    %84 = arith.maximumf %82, %83 : vector<8x512xf32>
    %85 = vector.extract_strided_slice %26 {offsets = [3, 0], sizes = [8, 1], strides = [1, 1]} : vector<14x1xf32> to vector<8x1xf32>
    %86 = vector.broadcast %85 : vector<8x1xf32> to vector<8x512xf32>
    %87 = arith.mulf %84, %86 : vector<8x512xf32>
    %c0_i32_32 = arith.constant 0 : i32
    %88 = arith.cmpi eq, %arg1, %c0_i32_32 : i32
    %89 = arith.extui %88 : i1 to i32
    %c0_i32_33 = arith.constant 0 : i32
    %90 = arith.cmpi ne, %89, %c0_i32_33 : i32
    scf.if %90 {
      %cst_42 = arith.constant 0.000000e+00 : f32
      %100 = vector.broadcast %cst_42 : f32 to vector<1x1x512xf32>
      %c0_43 = arith.constant 0 : index
      %c0_44 = arith.constant 0 : index
      %c0_45 = arith.constant 0 : index
      %101 = vector.load %arg11[%c0_43, %c0_44, %c0_45] : memref<1x1x512xf32, #tpu.memory_space<vmem>>, vector<1x1x512xf32>
      tpu.vector_store %arg11[%c0_43, %c0_44, %c0_45], %100 {strides = array<i32>} : memref<1x1x512xf32, #tpu.memory_space<vmem>>, vector<1x1x512xf32>,
    } else {
    }
    %c0_34 = arith.constant 0 : index
    %c0_35 = arith.constant 0 : index
    %c0_36 = arith.constant 0 : index
    %91 = vector.load %arg11[%c0_34, %c0_35, %c0_36] : memref<1x1x512xf32, #tpu.memory_space<vmem>>, vector<1x1x512xf32>
    %cst_37 = arith.constant dense<0.000000e+00> : vector<512xf32>
    %92 = vector.multi_reduction <add>, %87, %cst_37 [0] : vector<8x512xf32> to vector<512xf32>
    %93 = vector.shape_cast %92 : vector<512xf32> to vector<1x512xf32>
    %94 = vector.shape_cast %93 : vector<1x512xf32> to vector<1x1x512xf32>
    %95 = arith.addf %91, %94 : vector<1x1x512xf32>
    %c0_38 = arith.constant 0 : index
    %c0_39 = arith.constant 0 : index
    %c0_40 = arith.constant 0 : index
    %96 = vector.load %arg11[%c0_38, %c0_39, %c0_40] : memref<1x1x512xf32, #tpu.memory_space<vmem>>, vector<1x1x512xf32>
    tpu.vector_store %arg11[%c0_38, %c0_39, %c0_40], %95 {strides = array<i32>} : memref<1x1x512xf32, #tpu.memory_space<vmem>>, vector<1x1x512xf32>,
    %c2_i32 = arith.constant 2 : i32
    %97 = arith.cmpi eq, %arg1, %c2_i32 : i32
    %98 = arith.extui %97 : i1 to i32
    %c0_i32_41 = arith.constant 0 : i32
    %99 = arith.cmpi ne, %98, %c0_i32_41 : i32
    scf.if %99 {
      %c0_42 = arith.constant 0 : index
      %c0_43 = arith.constant 0 : index
      %c0_44 = arith.constant 0 : index
      %100 = vector.load %arg11[%c0_42, %c0_43, %c0_44] : memref<1x1x512xf32, #tpu.memory_space<vmem>>, vector<1x1x512xf32>
      %cst_45 = arith.constant 5.000000e-02 : f32
      %101 = vector.broadcast %cst_45 : f32 to vector<1x1x512xf32>
      %102 = arith.mulf %100, %101 : vector<1x1x512xf32>
      %c0_46 = arith.constant 0 : index
      %c0_47 = arith.constant 0 : index
      %c0_48 = arith.constant 0 : index
      %103 = vector.load %arg11[%c0_46, %c0_47, %c0_48] : memref<1x1x512xf32, #tpu.memory_space<vmem>>, vector<1x1x512xf32>
      tpu.vector_store %arg11[%c0_46, %c0_47, %c0_48], %102 {strides = array<i32>} : memref<1x1x512xf32, #tpu.memory_space<vmem>>, vector<1x1x512xf32>,
    } else {
    }
    return
  }
  func.func @transform_1(%arg0: i32, %arg1: i32) -> (i32, i32) {
    %c0_i32 = arith.constant 0 : i32
    %c0_i32_0 = arith.constant 0 : i32
    %c0_i32_1 = arith.constant 0 : i32
    return %c0_i32, %c0_i32_0 : i32, i32
  }
  func.func @transform_2(%arg0: i32, %arg1: i32) -> (i32, i32) {
    %c0_i32 = arith.constant 0 : i32
    %c0_i32_0 = arith.constant 0 : i32
    %c0_i32_1 = arith.constant 0 : i32
    return %c0_i32, %c0_i32_0 : i32, i32
  }
  func.func @transform_3(%arg0: i32, %arg1: i32) -> (i32, i32) {
    %c0_i32 = arith.constant 0 : i32
    %c0_i32_0 = arith.constant 0 : i32
    %c0_i32_1 = arith.constant 0 : i32
    return %c0_i32, %c0_i32_0 : i32, i32
  }
  func.func @transform_4(%arg0: i32, %arg1: i32) -> (i32, i32) {
    %c0_i32 = arith.constant 0 : i32
    %c0_i32_0 = arith.constant 0 : i32
    %c0_i32_1 = arith.constant 0 : i32
    return %c0_i32, %c0_i32_0 : i32, i32
  }
  func.func @transform_5(%arg0: i32, %arg1: i32) -> (i32, i32) {
    %c0_i32 = arith.constant 0 : i32
    %c0_i32_0 = arith.constant 0 : i32
    %c0_i32_1 = arith.constant 0 : i32
    return %c0_i32, %c0_i32_0 : i32, i32
  }
  func.func @transform_6(%arg0: i32, %arg1: i32) -> (i32, i32) {
    %c0_i32 = arith.constant 0 : i32
    %c0_i32_0 = arith.constant 0 : i32
    %c0_i32_1 = arith.constant 0 : i32
    return %c0_i32, %c0_i32_0 : i32, i32
  }
  func.func @transform_7(%arg0: i32, %arg1: i32) -> (i32, i32) {
    %c0_i32 = arith.constant 0 : i32
    %c0_i32_0 = arith.constant 0 : i32
    %c0_i32_1 = arith.constant 0 : i32
    return %c0_i32, %c0_i32_0 : i32, i32
  }
  func.func @transform_8(%arg0: i32, %arg1: i32) -> (i32, i32) {
    %c0_i32 = arith.constant 0 : i32
    %c0_i32_0 = arith.constant 0 : i32
    %c0_i32_1 = arith.constant 0 : i32
    return %c0_i32, %c0_i32_0 : i32, i32
  }
  func.func @transform_9(%arg0: i32, %arg1: i32) -> (i32, i32, i32) {
    %c0_i32 = arith.constant 0 : i32
    %c0_i32_0 = arith.constant 0 : i32
    %c0_i32_1 = arith.constant 0 : i32
    return %arg0, %c0_i32, %c0_i32_0 : i32, i32, i32
  }
}

</mosaic_0001>

<llo_original>
// kernel: tpu_custom_call.1
$region0: #{tpu_custom_call.1}
  #allocation0 [shape = 'u32[]', space=smem, size = 0x4, offset = 0x4, fixed_abs, tag = 'smem constant byte address 0x4 - core index']
  #allocation1 [shape = 'u32[72,128]{1,0:T(1,128)}', space=vmem, size = 0x9000, scoped, tag = 'internal scratch']
  #allocation2 [shape = 'bf16[2,16,128]{2,1,0:T(8,128)(2,1)}', space=vmem, size = 0x2000, scoped, tag = 'scratch operand']
  #allocation3 [shape = 's32[2]{0}', space=sflag, size = 0x8, scoped, tag = 'scratch operand']
  #allocation14 [shape = 's32[]', space=sflag, size = 0x4, offset = 0, fixed_abs, tag = 'sflag constant byte address 0x0 - dummy sync flag']
  #allocation15 [shape = 's32[]', space=sflag, size = 0x4, offset = 0, fixed_abs, tag = 'sflag constant byte address 0x0 - dummy sync flag']
  #allocation16 [shape = 'u32[]', space=smem, size = 0x4, offset = 0x44, fixed_abs, tag = 'smem constant byte address 0x44 - assertion arg 0']
  #allocation17 [shape = 'u32[]', space=smem, size = 0x4, offset = 0x48, fixed_abs, tag = 'smem constant byte address 0x48 - assertion arg 1']
  #allocation18 [shape = 's32[]', space=sflag, size = 0x4, offset = 0, fixed_abs, tag = 'sflag constant byte address 0x0 - dummy sync flag']
  #allocation19 [shape = 's32[]', space=sflag, size = 0x4, offset = 0, fixed_abs, tag = 'sflag constant byte address 0x0 - dummy sync flag']
  %s0 = inlined_call_operand.hbm [shape: bf16[2,32,128], index: 0, kind: input, shape index: {}]
  %s1 = inlined_call_operand.hbm [shape: bf16[384,128], index: 1, kind: input, shape index: {}]
  %s2 = inlined_call_operand.vmem [shape: f32[1,128], index: 2, kind: input, shape index: {}]
  %s3 = inlined_call_operand.hbm [shape: bf16[384,128], index: 3, kind: input, shape index: {}]
  %s4 = inlined_call_operand.hbm [shape: f32[1,128], index: 4, kind: input, shape index: {}]
  %s5 = inlined_call_operand.hbm [shape: bf16[384,256], index: 5, kind: input, shape index: {}]
  %s6 = inlined_call_operand.vmem [shape: f32[1,256], index: 6, kind: input, shape index: {}]
  %s7 = inlined_call_operand.hbm [shape: bf16[768,512], index: 7, kind: input, shape index: {}]
  %s8 = inlined_call_operand.vmem [shape: f32[1,512], index: 8, kind: input, shape index: {}]
  %s9 = inlined_call_operand.hbm [shape: f32[2,1,512], index: 9, kind: output, shape index: {}]
  %s10 = sld [smem:[#allocation0]]
  $region109: #{tpu_custom_call.1} parent=0
    _
  %s12 = ssub.s32 1, %s10
  %s13 = scalar_select 0, %s12, %s10
  $region1: #{tpu_custom_call.1} parent=0
    #allocation4 [shape = 'u8[98304]{0}', space=vmem, size = 0x18000, scoped, tag = 'input window, operand 1, single buffered']
    #allocation5 [shape = 's32[2]{0}', space=sflag, size = 0x8, scoped, tag = 'scoped memory for tpu_custom_call.1']
    #allocation6 [shape = 's32[2]{0}', space=sflag, size = 0x8, scoped, tag = 'scoped memory for tpu_custom_call.1']
    #allocation7 [shape = 'u8[98304]{0}', space=vmem, size = 0x18000, scoped, tag = 'input window, operand 3, single buffered']
    #allocation8 [shape = 's32[1]{0}', space=sflag, size = 0x4, scoped, tag = 'scoped memory for tpu_custom_call.1']
    #allocation9 [shape = 'u8[512]{0}', space=vmem, size = 0x400, scoped, tag = 'input window, operand 4, single buffered']
    #allocation10 [shape = 'u8[196608]{0}', space=vmem, size = 0x30000, scoped, tag = 'input window, operand 5, single buffered']
    #allocation11 [shape = 's32[1]{0}', space=sflag, size = 0x4, scoped, tag = 'scoped memory for tpu_custom_call.1']
    #allocation12 [shape = 'u8[786432]{0}', space=vmem, size = 0xc0000, scoped, tag = 'input window, operand 7, single buffered']
    #allocation13 [shape = 'u8[4096]{0}', space=vmem, size = 0x1000, scoped, tag = 'output window, operand 0']
    %14 = vsyncpa [#allocation5], 0
    %15 = vsyncpa [#allocation8], 0
    %16 = vsyncpa [#allocation11], 0
    %17 = vsyncpa [#allocation6], 0
    %s18 = scalar_lea.sflag [#allocation6], 1
    %19 = vsyncpa %s18, 0
    loop: start=0, step=1, limit=8
    $region2: #{tpu_custom_call.1} parent=1 // loop_pre_header
      _
    $region3: #{tpu_custom_call.1} parent=1 // loop_header
      %s21 = sphi 0, %s25
      %p22 = scmp.ge.s32.totalorder %s21, 8
      %s28 = sphi 0, %s40
      %s29 = sphi 0, %s36
      %s30 = sphi 0, %s28
      %s31 = sphi 0, %s29
      %s32 = sphi 0, %s30
      %s33 = sphi 0, %s31
      %s41 = sphi 0, %s41
      %s43 = sphi 0, %s41
      %s44 = sphi 0, %s43
      %s58 = sphi 0, %s44
      %s62 = sphi 0, %s62
      %s64 = sphi 0, %s62
      %s65 = sphi 0, %s64
      %s79 = sphi 0, %s65
      %s83 = sphi 0, %s83
      %s85 = sphi 0, %s83
      %s86 = sphi 0, %s85
      %s100 = sphi 0, %s86
      %s104 = sphi 0, %s104
      %s106 = sphi 0, %s104
      %s107 = sphi 0, %s106
      %s121 = sphi 0, %s107
      %s125 = sphi 0, %s125
      %s127 = sphi 0, %s125
      %s128 = sphi 0, %s127
      %s142 = sphi 0, %s128
      %s146 = sphi 0, %s146
      %s148 = sphi 0, %s146
      %s149 = sphi 0, %s148
      %s163 = sphi 0, %s149
      %s167 = sphi 0, %s167
      %s169 = sphi 0, %s167
      %s170 = sphi 0, %s169
      %s184 = sphi 0, %s170
      %s188 = sphi 0, %s188
      %s190 = sphi 0, %s188
      %s191 = sphi 0, %s190
      %s205 = sphi 0, %s191
      %s211 = sphi 0, %s213
      %s214 = sphi 0, %s211
      %s215 = sphi 0, %s214
      %s231 = sphi 0, %s215
    $region4: #{tpu_custom_call.1} parent=1 // loop_header_branch
      %24 = sbr.rel (%p22) target = $region8
    $region5: #{tpu_custom_call.1} parent=1 // loop_body
      %s26 = ssub.s32 %s21, 1
      %s27 = ssub.s32 %s21, 2
      %s34 = sadd.s32 1, %s29
      %p35 = scmp.ge.s32.totalorder %s34, 3
      %s36 = scalar_select %p35, 0, %s34
      %s37 = sadd.s32 1, %s28
      %s38 = scalar_select %p35, %s37, %s28
      %p39 = scmp.ge.s32.totalorder %s38, 2
      %s40 = scalar_select %p39, 0, %s38
      %s42 = sadd.s32 %s41, 1
      %p45 = scmp.eq.s32.totalorder %s21, 5
      %p46 = scmp.ne.s32.totalorder %s41, %s43
      %p47 = scmp.eq.s32.totalorder %s21, 0
      %p48 = por %p46, %p47
      %p49 = scmp.ne.s32.totalorder %s41, %s43
      %p50 = scmp.eq.s32.totalorder %s26, 5
      %p51 = por %p49, %p50
      %p52 = scmp.ne.s32.totalorder %s43, %s44
      %p53 = scmp.eq.s32.totalorder %s26, 0
      %p54 = por %p52, %p53
      %p55 = scmp.ne.s32.totalorder %s43, %s44
      %p56 = scmp.eq.s32.totalorder %s27, 5
      %p57 = por %p55, %p56
      %p59 = scmp.ne.s32.totalorder %s44, %s58
      %p60 = scmp.eq.s32.totalorder %s27, 0
      %p61 = por %p59, %p60
      %s63 = sadd.s32 %s62, 1
      %p66 = scmp.eq.s32.totalorder %s21, 5
      %p67 = scmp.ne.s32.totalorder %s62, %s64
      %p68 = scmp.eq.s32.totalorder %s21, 0
      %p69 = por %p67, %p68
      %p70 = scmp.ne.s32.totalorder %s62, %s64
      %p71 = scmp.eq.s32.totalorder %s26, 5
      %p72 = por %p70, %p71
      %p73 = scmp.ne.s32.totalorder %s64, %s65
      %p74 = scmp.eq.s32.totalorder %s26, 0
      %p75 = por %p73, %p74
      %p76 = scmp.ne.s32.totalorder %s64, %s65
      %p77 = scmp.eq.s32.totalorder %s27, 5
      %p78 = por %p76, %p77
      %p80 = scmp.ne.s32.totalorder %s65, %s79
      %p81 = scmp.eq.s32.totalorder %s27, 0
      %p82 = por %p80, %p81
      %s84 = sadd.s32 %s83, 1
      %p87 = scmp.eq.s32.totalorder %s21, 5
      %p88 = scmp.ne.s32.totalorder %s83, %s85
      %p89 = scmp.eq.s32.totalorder %s21, 0
      %p90 = por %p88, %p89
      %p91 = scmp.ne.s32.totalorder %s83, %s85
      %p92 = scmp.eq.s32.totalorder %s26, 5
      %p93 = por %p91, %p92
      %p94 = scmp.ne.s32.totalorder %s85, %s86
      %p95 = scmp.eq.s32.totalorder %s26, 0
      %p96 = por %p94, %p95
      %p97 = scmp.ne.s32.totalorder %s85, %s86
      %p98 = scmp.eq.s32.totalorder %s27, 5
      %p99 = por %p97, %p98
      %p101 = scmp.ne.s32.totalorder %s86, %s100
      %p102 = scmp.eq.s32.totalorder %s27, 0
      %p103 = por %p101, %p102
      %s105 = sadd.s32 %s104, 1
      %p108 = scmp.eq.s32.totalorder %s21, 5
      %p109 = scmp.ne.s32.totalorder %s104, %s106
      %p110 = scmp.eq.s32.totalorder %s21, 0
      %p111 = por %p109, %p110
      %p112 = scmp.ne.s32.totalorder %s104, %s106
      %p113 = scmp.eq.s32.totalorder %s26, 5
      %p114 = por %p112, %p113
      %p115 = scmp.ne.s32.totalorder %s106, %s107
      %p116 = scmp.eq.s32.totalorder %s26, 0
      %p117 = por %p115, %p116
      %p118 = scmp.ne.s32.totalorder %s106, %s107
      %p119 = scmp.eq.s32.totalorder %s27, 5
      %p120 = por %p118, %p119
      %p122 = scmp.ne.s32.totalorder %s107, %s121
      %p123 = scmp.eq.s32.totalorder %s27, 0
      %p124 = por %p122, %p123
      %s126 = sadd.s32 %s125, 1
      %p129 = scmp.eq.s32.totalorder %s21, 5
      %p130 = scmp.ne.s32.totalorder %s125, %s127
      %p131 = scmp.eq.s32.totalorder %s21, 0
      %p132 = por %p130, %p131
      %p133 = scmp.ne.s32.totalorder %s125, %s127
      %p134 = scmp.eq.s32.totalorder %s26, 5
      %p135 = por %p133, %p134
      %p136 = scmp.ne.s32.totalorder %s127, %s128
      %p137 = scmp.eq.s32.totalorder %s26, 0
      %p138 = por %p136, %p137
      %p139 = scmp.ne.s32.totalorder %s127, %s128
      %p140 = scmp.eq.s32.totalorder %s27, 5
      %p141 = por %p139, %p140
      %p143 = scmp.ne.s32.totalorder %s128, %s142
      %p144 = scmp.eq.s32.totalorder %s27, 0
      %p145 = por %p143, %p144
      %s147 = sadd.s32 %s146, 1
      %p150 = scmp.eq.s32.totalorder %s21, 5
      %p151 = scmp.ne.s32.totalorder %s146, %s148
      %p152 = scmp.eq.s32.totalorder %s21, 0
      %p153 = por %p151, %p152
      %p154 = scmp.ne.s32.totalorder %s146, %s148
      %p155 = scmp.eq.s32.totalorder %s26, 5
      %p156 = por %p154, %p155
      %p157 = scmp.ne.s32.totalorder %s148, %s149
      %p158 = scmp.eq.s32.totalorder %s26, 0
      %p159 = por %p157, %p158
      %p160 = scmp.ne.s32.totalorder %s148, %s149
      %p161 = scmp.eq.s32.totalorder %s27, 5
      %p162 = por %p160, %p161
      %p164 = scmp.ne.s32.totalorder %s149, %s163
      %p165 = scmp.eq.s32.totalorder %s27, 0
      %p166 = por %p164, %p165
      %s168 = sadd.s32 %s167, 1
      %p171 = scmp.eq.s32.totalorder %s21, 5
      %p172 = scmp.ne.s32.totalorder %s167, %s169
      %p173 = scmp.eq.s32.totalorder %s21, 0
      %p174 = por %p172, %p173
      %p175 = scmp.ne.s32.totalorder %s167, %s169
      %p176 = scmp.eq.s32.totalorder %s26, 5
      %p177 = por %p175, %p176
      %p178 = scmp.ne.s32.totalorder %s169, %s170
      %p179 = scmp.eq.s32.totalorder %s26, 0
      %p180 = por %p178, %p179
      %p181 = scmp.ne.s32.totalorder %s169, %s170
      %p182 = scmp.eq.s32.totalorder %s27, 5
      %p183 = por %p181, %p182
      %p185 = scmp.ne.s32.totalorder %s170, %s184
      %p186 = scmp.eq.s32.totalorder %s27, 0
      %p187 = por %p185, %p186
      %s189 = sadd.s32 %s188, 1
      %p192 = scmp.eq.s32.totalorder %s21, 5
      %p193 = scmp.ne.s32.totalorder %s188, %s190
      %p194 = scmp.eq.s32.totalorder %s21, 0
      %p195 = por %p193, %p194
      %p196 = scmp.ne.s32.totalorder %s188, %s190
      %p197 = scmp.eq.s32.totalorder %s26, 5
      %p198 = por %p196, %p197
      %p199 = scmp.ne.s32.totalorder %s190, %s191
      %p200 = scmp.eq.s32.totalorder %s26, 0
      %p201 = por %p199, %p200
      %p202 = scmp.ne.s32.totalorder %s190, %s191
      %p203 = scmp.eq.s32.totalorder %s27, 5
      %p204 = por %p202, %p203
      %p206 = scmp.ne.s32.totalorder %s191, %s205
      %p207 = scmp.eq.s32.totalorder %s27, 0
      %p208 = por %p206, %p207
      %s209 = ssub.s32 %s28, %s40
      %p210 = scmp.eq.s32.totalorder %s209, 0
      %s212 = sadd.s32 %s211, 1
      %s213 = scalar_select %p210, %s211, %s212
      %p216 = pneg %p210
      %p217 = scmp.eq.s32.totalorder %s21, 5
      %p218 = por %p216, %p217
      %p219 = scmp.ne.s32.totalorder %s211, %s214
      %p220 = scmp.eq.s32.totalorder %s21, 0
      %p221 = por %p219, %p220
      %p222 = scmp.ne.s32.totalorder %s211, %s214
      %p223 = scmp.eq.s32.totalorder %s26, 5
      %p224 = por %p222, %p223
      %p225 = scmp.ne.s32.totalorder %s214, %s215
      %p226 = scmp.eq.s32.totalorder %s26, 0
      %p227 = por %p225, %p226
      %p228 = scmp.ne.s32.totalorder %s214, %s215
      %p229 = scmp.eq.s32.totalorder %s27, 5
      %p230 = por %p228, %p229
      %p232 = scmp.ne.s32.totalorder %s215, %s231
      %p233 = scmp.eq.s32.totalorder %s27, 0
      %p234 = por %p232, %p233
      %p235 = scmp.le.s32.totalorder 1, %s21
      %p236 = scmp.lt.s32.totalorder %s21, 7
      %p237 = pnand %p235, %p236
      %p238 = pneg %p237
      // Predicated region
      $region9: #{tpu_custom_call.1} parent=5 // pred_check
        _
      $region10: #{tpu_custom_call.1} parent=5 // pred_check_branch
        %240 = sbr.rel (%p237) target = $region12
      $region11: #{tpu_custom_call.1} parent=5 // pred_region
        %s241 = ssub.s32 %s21, 1
        // Predicated region
        $region13: #{tpu_custom_call.1} parent=11 // pred_check
          %p242 = pneg %p54
        $region14: #{tpu_custom_call.1} parent=11 // pred_check_branch
          %244 = sbr.rel (%p242) target = $region16
        $region15: #{tpu_custom_call.1} parent=11 // pred_region
          %246 = vsyncadd [#allocation5], 0
          %s247 = sshll.u32 %s1, 4
          %s248 = int_to_ptr.hbm [resolvable:$true] %s247
          %s249 = sshll.u32 [#allocation4], 4
          %s250 = int_to_ptr.vmem [resolvable:$true] %s249
          %255 = dma.hbm_to_vmem [thread:$0]  %s248, 3072, %s250, [#allocation5], 64, 64, 4
        $region16: #{tpu_custom_call.1} parent=11 // pred_fallthru
          _
        // Predicated region
        $region17: #{tpu_custom_call.1} parent=11 // pred_check
          %p256 = pneg %p75
        $region18: #{tpu_custom_call.1} parent=11 // pred_check_branch
          %258 = sbr.rel (%p256) target = $region20
        $region19: #{tpu_custom_call.1} parent=11 // pred_region
          _
        $region20: #{tpu_custom_call.1} parent=11 // pred_fallthru
          _
        // Predicated region
        $region21: #{tpu_custom_call.1} parent=11 // pred_check
          %p259 = pneg %p96
        $region22: #{tpu_custom_call.1} parent=11 // pred_check_branch
          %261 = sbr.rel (%p259) target = $region24
        $region23: #{tpu_custom_call.1} parent=11 // pred_region
          %263 = vsyncadd [#allocation8], 0
          %s264 = sshll.u32 %s3, 4
          %s265 = int_to_ptr.hbm [resolvable:$true] %s264
          %s266 = sshll.u32 [#allocation7], 4
          %s267 = int_to_ptr.vmem [resolvable:$true] %s266
          %272 = dma.hbm_to_vmem [thread:$0]  %s265, 3072, %s267, [#allocation8], 64, 64, 4
        $region24: #{tpu_custom_call.1} parent=11 // pred_fallthru
          _
        // Predicated region
        $region25: #{tpu_custom_call.1} parent=11 // pred_check
          %p273 = pneg %p117
        $region26: #{tpu_custom_call.1} parent=11 // pred_check_branch
          %275 = sbr.rel (%p273) target = $region28
        $region27: #{tpu_custom_call.1} parent=11 // pred_region
          %277 = vsyncadd [#allocation8], 0
          %s279 = sshll.u32 %s4, 4
          %s280 = int_to_ptr.hbm [resolvable:$true] %s279
          %s281 = sshll.u32 [#allocation9], 4
          %s282 = int_to_ptr.vmem [resolvable:$true] %s281
          %284 = dma.hbm_to_vmem [thread:$0]  %s280, 16, %s282, [#allocation8]
        $region28: #{tpu_custom_call.1} parent=11 // pred_fallthru
          _
        // Predicated region
        $region29: #{tpu_custom_call.1} parent=11 // pred_check
          %p285 = pneg %p138
        $region30: #{tpu_custom_call.1} parent=11 // pred_check_branch
          %287 = sbr.rel (%p285) target = $region32
        $region31: #{tpu_custom_call.1} parent=11 // pred_region
          %289 = vsyncadd [#allocation11], 0
          %s290 = sshll.u32 %s5, 4
          %s291 = int_to_ptr.hbm [resolvable:$true] %s290
          %s292 = sshll.u32 [#allocation10], 4
          %s293 = int_to_ptr.vmem [resolvable:$true] %s292
          %298 = dma.hbm_to_vmem [thread:$0]  %s291, 6144, %s293, [#allocation11], 128, 128, 8
        $region32: #{tpu_custom_call.1} parent=11 // pred_fallthru
          _
        // Predicated region
        $region33: #{tpu_custom_call.1} parent=11 // pred_check
          %p299 = pneg %p159
        $region34: #{tpu_custom_call.1} parent=11 // pred_check_branch
          %301 = sbr.rel (%p299) target = $region36
        $region35: #{tpu_custom_call.1} parent=11 // pred_region
          _
        $region36: #{tpu_custom_call.1} parent=11 // pred_fallthru
          _
        // Predicated region
        $region37: #{tpu_custom_call.1} parent=11 // pred_check
          %p302 = pneg %p180
        $region38: #{tpu_custom_call.1} parent=11 // pred_check_branch
          %304 = sbr.rel (%p302) target = $region40
        $region39: #{tpu_custom_call.1} parent=11 // pred_region
          %306 = vsyncadd [#allocation11], 0
          %s307 = sshll.u32 %s7, 4
          %s308 = int_to_ptr.hbm [resolvable:$true] %s307
          %s309 = sshll.u32 [#allocation12], 4
          %s310 = int_to_ptr.vmem [resolvable:$true] %s309
          %315 = dma.hbm_to_vmem [thread:$0]  %s308, 24576, %s310, [#allocation11], 256, 256, 16
        $region40: #{tpu_custom_call.1} parent=11 // pred_fallthru
          _
        // Predicated region
        $region41: #{tpu_custom_call.1} parent=11 // pred_check
          %p316 = pneg %p201
        $region42: #{tpu_custom_call.1} parent=11 // pred_check_branch
          %318 = sbr.rel (%p316) target = $region44
        $region43: #{tpu_custom_call.1} parent=11 // pred_region
          _
        $region44: #{tpu_custom_call.1} parent=11 // pred_fallthru
          _
      $region12: #{tpu_custom_call.1} parent=5 // pred_fallthru
        _
      %p319 = scmp.lt.s32.totalorder %s21, 6
      // Predicated region
      $region45: #{tpu_custom_call.1} parent=5 // pred_check
        %p320 = pneg %p319
      $region46: #{tpu_custom_call.1} parent=5 // pred_check_branch
        %322 = sbr.rel (%p320) target = $region48
      $region47: #{tpu_custom_call.1} parent=5 // pred_region
        _
      $region48: #{tpu_custom_call.1} parent=5 // pred_fallthru
        _
      %p323 = scmp.le.s32.totalorder 1, %s21
      %p324 = scmp.lt.s32.totalorder %s21, 7
      %p325 = pnand %p323, %p324
      %p326 = pneg %p325
      // Predicated region
      $region49: #{tpu_custom_call.1} parent=5 // pred_check
        _
      $region50: #{tpu_custom_call.1} parent=5 // pred_check_branch
        %328 = sbr.rel (%p325) target = $region52
      $region51: #{tpu_custom_call.1} parent=5 // pred_region
        %s329 = ssub.s32 %s21, 1
        // Predicated region
        $region53: #{tpu_custom_call.1} parent=51 // pred_check
          %p330 = pneg %p54
        $region54: #{tpu_custom_call.1} parent=51 // pred_check_branch
          %332 = sbr.rel (%p330) target = $region56
        $region55: #{tpu_custom_call.1} parent=51 // pred_region
          %334 = dma.done [#allocation5], 3072
        $region56: #{tpu_custom_call.1} parent=51 // pred_fallthru
          _
        // Predicated region
        $region57: #{tpu_custom_call.1} parent=51 // pred_check
          %p335 = pneg %p96
        $region58: #{tpu_custom_call.1} parent=51 // pred_check_branch
          %337 = sbr.rel (%p335) target = $region60
        $region59: #{tpu_custom_call.1} parent=51 // pred_region
          %339 = dma.done [#allocation8], 3072
        $region60: #{tpu_custom_call.1} parent=51 // pred_fallthru
          _
        // Predicated region
        $region61: #{tpu_custom_call.1} parent=51 // pred_check
          %p340 = pneg %p117
        $region62: #{tpu_custom_call.1} parent=51 // pred_check_branch
          %342 = sbr.rel (%p340) target = $region64
        $region63: #{tpu_custom_call.1} parent=51 // pred_region
          %344 = dma.done [#allocation8], 16
        $region64: #{tpu_custom_call.1} parent=51 // pred_fallthru
          _
        // Predicated region
        $region65: #{tpu_custom_call.1} parent=51 // pred_check
          %p345 = pneg %p138
        $region66: #{tpu_custom_call.1} parent=51 // pred_check_branch
          %347 = sbr.rel (%p345) target = $region68
        $region67: #{tpu_custom_call.1} parent=51 // pred_region
          %349 = dma.done [#allocation11], 6144
        $region68: #{tpu_custom_call.1} parent=51 // pred_fallthru
          _
        // Predicated region
        $region69: #{tpu_custom_call.1} parent=51 // pred_check
          %p350 = pneg %p180
        $region70: #{tpu_custom_call.1} parent=51 // pred_check_branch
          %352 = sbr.rel (%p350) target = $region72
        $region71: #{tpu_custom_call.1} parent=51 // pred_region
          %354 = dma.done [#allocation11], 24576
        $region72: #{tpu_custom_call.1} parent=51 // pred_fallthru
          _
        %p355 = pneg %p54
        %p356 = pneg %p51
        %p357 = pneg %p75
        %p358 = pneg %p72
        %p359 = pneg %p96
        %p360 = pneg %p93
        %p361 = pneg %p117
        %p362 = pneg %p114
        %p363 = pneg %p138
        %p364 = pneg %p135
        %p365 = pneg %p159
        %p366 = pneg %p156
        %p367 = pneg %p180
        %p368 = pneg %p177
        %p369 = pneg %p201
        %p370 = pneg %p198
        %p371 = pneg %p227
        %p372 = pneg %p224
        %s373 = sand.u32 %s214, 1
        %s374 = scalar_lea.sflag [#allocation6], %s373
        %s375 = sand.u32 %s214, 1
        %s376 = smul.addr %s375, 4
        %s377 = scalar_lea.vmem [#allocation13], %s376
        %s378 = smul.u32 %s31, 8
        %s379 = sand.u32 %s31, 1
        %p380 = scmp.eq.s32.totalorder %s31, 0
        // Predicated region
        $region73: #{tpu_custom_call.1} parent=51 // pred_check
          %p381 = pneg %p380
        $region74: #{tpu_custom_call.1} parent=51 // pred_check_branch
          %383 = sbr.rel (%p381) target = $region76
        $region75: #{tpu_custom_call.1} parent=51 // pred_region
          %s384 = sshra.s32 %s378, 3
          %s385 = sand.u32 %s378, 7
          %s386 = smul.u32 %s30, 4
          %s387 = sadd.s32 %s384, %s386
          %s388 = smul.addr %s387, 4
          %s389 = scalar_lea.hbm %s0, %s388
          %s390 = smul.u32 %s379, 2
          %s391 = smul.addr %s390, 4
          %s392 = scalar_lea.vmem [#allocation2], %s391
          %s393 = scalar_lea.sflag [#allocation3], %s379
          // Predicated region
          $region77: #{tpu_custom_call.1} parent=75 // pred_check
            _
          $region78: #{tpu_custom_call.1} parent=75 // pred_check_branch
            %395 = sbr.rel target = $region80
          $region79: #{tpu_custom_call.1} parent=75 // pred_region
            %396 = sst [smem:[#allocation16]] [#allocation15]
            %397 = sst [smem:[#allocation17]] [#allocation14]
          $region80: #{tpu_custom_call.1} parent=75 // pred_fallthru
            _
          %399 = shalt.err (0)
          %s401 = sshll.u32 %s389, 4
          %s402 = int_to_ptr.hbm [resolvable:$true] %s401
          %s403 = sshll.u32 %s392, 4
          %s404 = int_to_ptr.vmem [resolvable:$true] %s403
          %406 = dma.hbm_to_vmem [thread:$0]  %s402, 128, %s404, %s393
        $region76: #{tpu_custom_call.1} parent=51 // pred_fallthru
          _
        %s407 = sadd.s32 %s31, 1
        %p408 = scmp.lt.s32.totalorder %s407, 3
        // Predicated region
        $region81: #{tpu_custom_call.1} parent=51 // pred_check
          %p409 = pneg %p408
        $region82: #{tpu_custom_call.1} parent=51 // pred_check_branch
          %411 = sbr.rel (%p409) target = $region84
        $region83: #{tpu_custom_call.1} parent=51 // pred_region
          %s412 = smul.u32 %s407, 8
          %s413 = ssub.s32 1, %s379
          %s414 = sshra.s32 %s412, 3
          %s415 = sand.u32 %s412, 7
          %s416 = smul.u32 %s30, 4
          %s417 = sadd.s32 %s414, %s416
          %s418 = smul.addr %s417, 4
          %s419 = scalar_lea.hbm %s0, %s418
          %s420 = smul.u32 %s413, 2
          %s421 = smul.addr %s420, 4
          %s422 = scalar_lea.vmem [#allocation2], %s421
          %s423 = scalar_lea.sflag [#allocation3], %s413
          // Predicated region
          $region85: #{tpu_custom_call.1} parent=83 // pred_check
            _
          $region86: #{tpu_custom_call.1} parent=83 // pred_check_branch
            %425 = sbr.rel target = $region88
          $region87: #{tpu_custom_call.1} parent=83 // pred_region
            %426 = sst [smem:[#allocation16]] [#allocation19]
            %427 = sst [smem:[#allocation17]] [#allocation18]
          $region88: #{tpu_custom_call.1} parent=83 // pred_fallthru
            _
          %429 = shalt.err (0)
          %s431 = sshll.u32 %s419, 4
          %s432 = int_to_ptr.hbm [resolvable:$true] %s431
          %s433 = sshll.u32 %s422, 4
          %s434 = int_to_ptr.vmem [resolvable:$true] %s433
          %436 = dma.hbm_to_vmem [thread:$0]  %s432, 128, %s434, %s423
        $region84: #{tpu_custom_call.1} parent=51 // pred_fallthru
          _
        %s437 = smul.u32 %s379, 2
        %s438 = smul.addr %s437, 4
        %s439 = scalar_lea.vmem [#allocation2], %s438
        %s440 = scalar_lea.sflag [#allocation3], %s379
        %s441 = smul.u32 4, 2
        %s442 = smul.u32 %s441, 1
        %s443 = sshll.u32 %s442, 4
        %444 = dma.done %s440, %s443
        %s445 = ssub.s32 %s378, 3
        %v446 = vlaneseq
        %v447 = vshrl.u32 %v446, 7
        %v448 = vadd.s32 %v447, 8
        %v449 = vstv %s445
        %v450 = vadd.s32 %v449, %v447
        %v451 = vadd.s32 %v449, %v448
        %vm452 = vcmp.ge.s32.totalorder %v450, 0
        %vm453 = vcmp.ge.s32.totalorder %v451, 0
        %vm454 = vcmp.lt.s32.totalorder %v450, 20
        %vm455 = vcmp.lt.s32.totalorder %v451, 20
        %vm456 = vmand %vm452, %vm454
        %vm457 = vmand %vm453, %vm455
        %v458 = vsel %vm456, 1, 0
        %v459 = vsel %vm457, 1, 0
        %v460 = vcvt.s32.f32 %v458
        %v461 = vcvt.s32.f32 %v459
        %v462 = vld [vmem:[%s439] sm:$0xf]
        %v463 = vld [vmem:[%s439 + $0x4] sm:$0xf]
        %v466 = vunpack.c.l.b16 %v462
        %v467 = vunpack.c.l.b16 %v463
        %v468 = vpack.c.b16 %v467, %v466
        %v471 = vshrl.u32 %v468, 16
        %v473 = vshll.u32 %v468, 16
        %v475 = vrot.slane %v473, 1
        %v476 = vor.u32 %v471, %v475
        %v478 = vrot.slane %v468, 1
        %v480 = vld [vmem:[#allocation4] sm:$0xf]
        %v481 = vld [vmem:[#allocation4 + $0x4] sm:$0xf]
        %v482 = vld [vmem:[#allocation4 + $0x8] sm:$0xf]
        %v483 = vld [vmem:[#allocation4 + $0xc] sm:$0xf]
        %v484 = vld [vmem:[#allocation4 + $0x10] sm:$0xf]
        %v485 = vld [vmem:[#allocation4 + $0x14] sm:$0xf]
        %v486 = vld [vmem:[#allocation4 + $0x18] sm:$0xf]
        %v487 = vld [vmem:[#allocation4 + $0x1c] sm:$0xf]
        %v488 = vld [vmem:[#allocation4 + $0x20] sm:$0xf]
        %v489 = vld [vmem:[#allocation4 + $0x24] sm:$0xf]
        %v490 = vld [vmem:[#allocation4 + $0x28] sm:$0xf]
        %v491 = vld [vmem:[#allocation4 + $0x2c] sm:$0xf]
        %v492 = vld [vmem:[#allocation4 + $0x30] sm:$0xf]
        %v493 = vld [vmem:[#allocation4 + $0x34] sm:$0xf]
        %v494 = vld [vmem:[#allocation4 + $0x38] sm:$0xf]
        %v495 = vld [vmem:[#allocation4 + $0x3c] sm:$0xf]
        %v496 = vld [vmem:[#allocation4 + $0x40] sm:$0xf]
        %v497 = vld [vmem:[#allocation4 + $0x44] sm:$0xf]
        %v498 = vld [vmem:[#allocation4 + $0x48] sm:$0xf]
        %v499 = vld [vmem:[#allocation4 + $0x4c] sm:$0xf]
        %v500 = vld [vmem:[#allocation4 + $0x50] sm:$0xf]
        %v501 = vld [vmem:[#allocation4 + $0x54] sm:$0xf]
        %v502 = vld [vmem:[#allocation4 + $0x58] sm:$0xf]
        %v503 = vld [vmem:[#allocation4 + $0x5c] sm:$0xf]
        %v504 = vld [vmem:[#allocation4 + $0x60] sm:$0xf]
        %v505 = vld [vmem:[#allocation4 + $0x64] sm:$0xf]
        %v506 = vld [vmem:[#allocation4 + $0x68] sm:$0xf]
        %v507 = vld [vmem:[#allocation4 + $0x6c] sm:$0xf]
        %v508 = vld [vmem:[#allocation4 + $0x70] sm:$0xf]
        %v509 = vld [vmem:[#allocation4 + $0x74] sm:$0xf]
        %v510 = vld [vmem:[#allocation4 + $0x78] sm:$0xf]
        %v511 = vld [vmem:[#allocation4 + $0x7c] sm:$0xf]
        %v512 = vld [vmem:[#allocation4 + $0x80] sm:$0xf]
        %v513 = vld [vmem:[#allocation4 + $0x84] sm:$0xf]
        %v514 = vld [vmem:[#allocation4 + $0x88] sm:$0xf]
        %v515 = vld [vmem:[#allocation4 + $0x8c] sm:$0xf]
        %v516 = vld [vmem:[#allocation4 + $0x90] sm:$0xf]
        %v517 = vld [vmem:[#allocation4 + $0x94] sm:$0xf]
        %v518 = vld [vmem:[#allocation4 + $0x98] sm:$0xf]
        %v519 = vld [vmem:[#allocation4 + $0x9c] sm:$0xf]
        %v520 = vld [vmem:[#allocation4 + $0xa0] sm:$0xf]
        %v521 = vld [vmem:[#allocation4 + $0xa4] sm:$0xf]
        %v522 = vld [vmem:[#allocation4 + $0xa8] sm:$0xf]
        %v523 = vld [vmem:[#allocation4 + $0xac] sm:$0xf]
        %v524 = vld [vmem:[#allocation4 + $0xb0] sm:$0xf]
        %v525 = vld [vmem:[#allocation4 + $0xb4] sm:$0xf]
        %v526 = vld [vmem:[#allocation4 + $0xb8] sm:$0xf]
        %v527 = vld [vmem:[#allocation4 + $0xbc] sm:$0xf]
        %v528 = vld [vmem:[%s2] sm:$0x1]
        %v530 = vperm.slane %v528, 0
        %v580 = vunpack.c.l.b16 %v480
        %v581 = vunpack.c.l.b16 %v481
        %v582 = vunpack.c.l.b16 %v482
        %v583 = vunpack.c.l.b16 %v483
        %v584 = vunpack.c.l.b16 %v484
        %v585 = vunpack.c.l.b16 %v485
        %v586 = vunpack.c.l.b16 %v486
        %v587 = vunpack.c.l.b16 %v487
        %v588 = vunpack.c.l.b16 %v488
        %v589 = vunpack.c.l.b16 %v489
        %v590 = vunpack.c.l.b16 %v490
        %v591 = vunpack.c.l.b16 %v491
        %v592 = vunpack.c.l.b16 %v492
        %v593 = vunpack.c.l.b16 %v493
        %v594 = vunpack.c.l.b16 %v494
        %v595 = vunpack.c.l.b16 %v495
        %v596 = vunpack.c.l.b16 %v496
        %v597 = vunpack.c.l.b16 %v497
        %v598 = vunpack.c.l.b16 %v498
        %v599 = vunpack.c.l.b16 %v499
        %v600 = vunpack.c.l.b16 %v500
        %v601 = vunpack.c.l.b16 %v501
        %v602 = vunpack.c.l.b16 %v502
        %v603 = vunpack.c.l.b16 %v503
        %v604 = vunpack.c.l.b16 %v504
        %v605 = vunpack.c.l.b16 %v505
        %v606 = vunpack.c.l.b16 %v506
        %v607 = vunpack.c.l.b16 %v507
        %v608 = vunpack.c.l.b16 %v508
        %v609 = vunpack.c.l.b16 %v509
        %v610 = vunpack.c.l.b16 %v510
        %v611 = vunpack.c.l.b16 %v511
        %v612 = vunpack.c.l.b16 %v512
        %v613 = vunpack.c.l.b16 %v513
        %v614 = vunpack.c.l.b16 %v514
        %v615 = vunpack.c.l.b16 %v515
        %v616 = vunpack.c.l.b16 %v516
        %v617 = vunpack.c.l.b16 %v517
        %v618 = vunpack.c.l.b16 %v518
        %v619 = vunpack.c.l.b16 %v519
        %v620 = vunpack.c.l.b16 %v520
        %v621 = vunpack.c.l.b16 %v521
        %v622 = vunpack.c.l.b16 %v522
        %v623 = vunpack.c.l.b16 %v523
        %v624 = vunpack.c.l.b16 %v524
        %v625 = vunpack.c.l.b16 %v525
        %v626 = vunpack.c.l.b16 %v526
        %v627 = vunpack.c.l.b16 %v527
        %v628 = vpack.c.b16 %v581, %v580
        %v629 = vpack.c.b16 %v583, %v582
        %v630 = vpack.c.b16 %v585, %v584
        %v631 = vpack.c.b16 %v587, %v586
        %v632 = vpack.c.b16 %v589, %v588
        %v633 = vpack.c.b16 %v591, %v590
        %v634 = vpack.c.b16 %v593, %v592
        %v635 = vpack.c.b16 %v595, %v594
        %v636 = vpack.c.b16 %v597, %v596
        %v637 = vpack.c.b16 %v599, %v598
        %v638 = vpack.c.b16 %v601, %v600
        %v639 = vpack.c.b16 %v603, %v602
        %v640 = vpack.c.b16 %v605, %v604
        %v641 = vpack.c.b16 %v607, %v606
        %v642 = vpack.c.b16 %v609, %v608
        %v643 = vpack.c.b16 %v611, %v610
        %v644 = vpack.c.b16 %v613, %v612
        %v645 = vpack.c.b16 %v615, %v614
        %v646 = vpack.c.b16 %v617, %v616
        %v647 = vpack.c.b16 %v619, %v618
        %v648 = vpack.c.b16 %v621, %v620
        %v649 = vpack.c.b16 %v623, %v622
        %v650 = vpack.c.b16 %v625, %v624
        %v651 = vpack.c.b16 %v627, %v626
        %676 = vmatpush.bf16.msra.mxu0 %v635
        %677 = vmatpush.bf16.msra.mxu0 %v634
        %678 = vmatpush.bf16.msra.mxu0 %v633
        %679 = vmatpush.bf16.msra.mxu0 %v632
        %680 = vmatpush.bf16.msra.mxu0 %v631
        %681 = vmatpush.bf16.msra.mxu0 %v630
        %682 = vmatpush.bf16.msra.mxu0 %v629
        %683 = vmatpush.bf16.msra.mxu0 %v628
        %684 = vmatmul.bf16.gmra.mxu0 %v468
        %v685 = vpop.f32.mrf.mxu0
        %v686 = vadd.f32 %v530, %v685
        %v687 = vpop.f32.mrf.mxu0
        %v688 = vadd.f32 %v530, %v687
        %689 = vdwg.mxu0
        %690 = vmatpush.bf16.msra.mxu0 %v643
        %691 = vmatpush.bf16.msra.mxu0 %v642
        %692 = vmatpush.bf16.msra.mxu0 %v641
        %693 = vmatpush.bf16.msra.mxu0 %v640
        %694 = vmatpush.bf16.msra.mxu0 %v639
        %695 = vmatpush.bf16.msra.mxu0 %v638
        %696 = vmatpush.bf16.msra.mxu0 %v637
        %697 = vmatpush.bf16.msra.mxu0 %v636
        %698 = vmatmul.bf16.gmra.mxu0 %v476
        %v699 = vpop.f32.mrf.mxu0
        %v700 = vadd.f32 %v686, %v699
        %v701 = vpop.f32.mrf.mxu0
        %v702 = vadd.f32 %v688, %v701
        %703 = vdwg.mxu0
        %704 = vmatpush.bf16.msra.mxu0 %v651
        %705 = vmatpush.bf16.msra.mxu0 %v650
        %706 = vmatpush.bf16.msra.mxu0 %v649
        %707 = vmatpush.bf16.msra.mxu0 %v648
        %708 = vmatpush.bf16.msra.mxu0 %v647
        %709 = vmatpush.bf16.msra.mxu0 %v646
        %710 = vmatpush.bf16.msra.mxu0 %v645
        %711 = vmatpush.bf16.msra.mxu0 %v644
        %712 = vmatmul.bf16.gmra.mxu0 %v478
        %v713 = vpop.f32.mrf.mxu0
        %v714 = vadd.f32 %v700, %v713
        %v715 = vpop.f32.mrf.mxu0
        %v716 = vadd.f32 %v702, %v715
        %717 = vdwg.mxu0
        %v718 = vmax.f32 %v714, 0.0
        %v719 = vmax.f32 %v716, 0.0
        %v720 = vmul.f32 %v718, %v460
        %v721 = vmul.f32 %v719, %v461
        %v722 = vpack.c.bf16 %v720, %v720
        %v723 = vpack.c.bf16 %v721, %v721
        %v726 = vunpack.c.l.b16 %v722
        %v727 = vunpack.c.l.b16 %v723
        %v728 = vpack.c.b16 %v727, %v726
        %v731 = vshrl.u32 %v728, 16
        %v733 = vshll.u32 %v728, 16
        %v735 = vrot.slane %v733, 1
        %v736 = vor.u32 %v731, %v735
        %v738 = vrot.slane %v728, 1
        %v740 = vld [vmem:[#allocation7] sm:$0xf]
        %v741 = vld [vmem:[#allocation7 + $0x4] sm:$0xf]
        %v742 = vld [vmem:[#allocation7 + $0x8] sm:$0xf]
        %v743 = vld [vmem:[#allocation7 + $0xc] sm:$0xf]
        %v744 = vld [vmem:[#allocation7 + $0x10] sm:$0xf]
        %v745 = vld [vmem:[#allocation7 + $0x14] sm:$0xf]
        %v746 = vld [vmem:[#allocation7 + $0x18] sm:$0xf]
        %v747 = vld [vmem:[#allocation7 + $0x1c] sm:$0xf]
        %v748 = vld [vmem:[#allocation7 + $0x20] sm:$0xf]
        %v749 = vld [vmem:[#allocation7 + $0x24] sm:$0xf]
        %v750 = vld [vmem:[#allocation7 + $0x28] sm:$0xf]
        %v751 = vld [vmem:[#allocation7 + $0x2c] sm:$0xf]
        %v752 = vld [vmem:[#allocation7 + $0x30] sm:$0xf]
        %v753 = vld [vmem:[#allocation7 + $0x34] sm:$0xf]
        %v754 = vld [vmem:[#allocation7 + $0x38] sm:$0xf]
        %v755 = vld [vmem:[#allocation7 + $0x3c] sm:$0xf]
        %v756 = vld [vmem:[#allocation7 + $0x40] sm:$0xf]
        %v757 = vld [vmem:[#allocation7 + $0x44] sm:$0xf]
        %v758 = vld [vmem:[#allocation7 + $0x48] sm:$0xf]
        %v759 = vld [vmem:[#allocation7 + $0x4c] sm:$0xf]
        %v760 = vld [vmem:[#allocation7 + $0x50] sm:$0xf]
        %v761 = vld [vmem:[#allocation7 + $0x54] sm:$0xf]
        %v762 = vld [vmem:[#allocation7 + $0x58] sm:$0xf]
        %v763 = vld [vmem:[#allocation7 + $0x5c] sm:$0xf]
        %v764 = vld [vmem:[#allocation7 + $0x60] sm:$0xf]
        %v765 = vld [vmem:[#allocation7 + $0x64] sm:$0xf]
        %v766 = vld [vmem:[#allocation7 + $0x68] sm:$0xf]
        %v767 = vld [vmem:[#allocation7 + $0x6c] sm:$0xf]
        %v768 = vld [vmem:[#allocation7 + $0x70] sm:$0xf]
        %v769 = vld [vmem:[#allocation7 + $0x74] sm:$0xf]
        %v770 = vld [vmem:[#allocation7 + $0x78] sm:$0xf]
        %v771 = vld [vmem:[#allocation7 + $0x7c] sm:$0xf]
        %v772 = vld [vmem:[#allocation7 + $0x80] sm:$0xf]
        %v773 = vld [vmem:[#allocation7 + $0x84] sm:$0xf]
        %v774 = vld [vmem:[#allocation7 + $0x88] sm:$0xf]
        %v775 = vld [vmem:[#allocation7 + $0x8c] sm:$0xf]
        %v776 = vld [vmem:[#allocation7 + $0x90] sm:$0xf]
        %v777 = vld [vmem:[#allocation7 + $0x94] sm:$0xf]
        %v778 = vld [vmem:[#allocation7 + $0x98] sm:$0xf]
        %v779 = vld [vmem:[#allocation7 + $0x9c] sm:$0xf]
        %v780 = vld [vmem:[#allocation7 + $0xa0] sm:$0xf]
        %v781 = vld [vmem:[#allocation7 + $0xa4] sm:$0xf]
        %v782 = vld [vmem:[#allocation7 + $0xa8] sm:$0xf]
        %v783 = vld [vmem:[#allocation7 + $0xac] sm:$0xf]
        %v784 = vld [vmem:[#allocation7 + $0xb0] sm:$0xf]
        %v785 = vld [vmem:[#allocation7 + $0xb4] sm:$0xf]
        %v786 = vld [vmem:[#allocation7 + $0xb8] sm:$0xf]
        %v787 = vld [vmem:[#allocation7 + $0xbc] sm:$0xf]
        %v788 = vld [vmem:[#allocation9] sm:$0x1]
        %v790 = vperm.slane %v788, 0
        %v840 = vunpack.c.l.b16 %v740
        %v841 = vunpack.c.l.b16 %v741
        %v842 = vunpack.c.l.b16 %v742
        %v843 = vunpack.c.l.b16 %v743
        %v844 = vunpack.c.l.b16 %v744
        %v845 = vunpack.c.l.b16 %v745
        %v846 = vunpack.c.l.b16 %v746
        %v847 = vunpack.c.l.b16 %v747
        %v848 = vunpack.c.l.b16 %v748
        %v849 = vunpack.c.l.b16 %v749
        %v850 = vunpack.c.l.b16 %v750
        %v851 = vunpack.c.l.b16 %v751
        %v852 = vunpack.c.l.b16 %v752
        %v853 = vunpack.c.l.b16 %v753
        %v854 = vunpack.c.l.b16 %v754
        %v855 = vunpack.c.l.b16 %v755
        %v856 = vunpack.c.l.b16 %v756
        %v857 = vunpack.c.l.b16 %v757
        %v858 = vunpack.c.l.b16 %v758
        %v859 = vunpack.c.l.b16 %v759
        %v860 = vunpack.c.l.b16 %v760
        %v861 = vunpack.c.l.b16 %v761
        %v862 = vunpack.c.l.b16 %v762
        %v863 = vunpack.c.l.b16 %v763
        %v864 = vunpack.c.l.b16 %v764
        %v865 = vunpack.c.l.b16 %v765
        %v866 = vunpack.c.l.b16 %v766
        %v867 = vunpack.c.l.b16 %v767
        %v868 = vunpack.c.l.b16 %v768
        %v869 = vunpack.c.l.b16 %v769
        %v870 = vunpack.c.l.b16 %v770
        %v871 = vunpack.c.l.b16 %v771
        %v872 = vunpack.c.l.b16 %v772
        %v873 = vunpack.c.l.b16 %v773
        %v874 = vunpack.c.l.b16 %v774
        %v875 = vunpack.c.l.b16 %v775
        %v876 = vunpack.c.l.b16 %v776
        %v877 = vunpack.c.l.b16 %v777
        %v878 = vunpack.c.l.b16 %v778
        %v879 = vunpack.c.l.b16 %v779
        %v880 = vunpack.c.l.b16 %v780
        %v881 = vunpack.c.l.b16 %v781
        %v882 = vunpack.c.l.b16 %v782
        %v883 = vunpack.c.l.b16 %v783
        %v884 = vunpack.c.l.b16 %v784
        %v885 = vunpack.c.l.b16 %v785
        %v886 = vunpack.c.l.b16 %v786
        %v887 = vunpack.c.l.b16 %v787
        %v888 = vpack.c.b16 %v841, %v840
        %v889 = vpack.c.b16 %v843, %v842
        %v890 = vpack.c.b16 %v845, %v844
        %v891 = vpack.c.b16 %v847, %v846
        %v892 = vpack.c.b16 %v849, %v848
        %v893 = vpack.c.b16 %v851, %v850
        %v894 = vpack.c.b16 %v853, %v852
        %v895 = vpack.c.b16 %v855, %v854
        %v896 = vpack.c.b16 %v857, %v856
        %v897 = vpack.c.b16 %v859, %v858
        %v898 = vpack.c.b16 %v861, %v860
        %v899 = vpack.c.b16 %v863, %v862
        %v900 = vpack.c.b16 %v865, %v864
        %v901 = vpack.c.b16 %v867, %v866
        %v902 = vpack.c.b16 %v869, %v868
        %v903 = vpack.c.b16 %v871, %v870
        %v904 = vpack.c.b16 %v873, %v872
        %v905 = vpack.c.b16 %v875, %v874
        %v906 = vpack.c.b16 %v877, %v876
        %v907 = vpack.c.b16 %v879, %v878
        %v908 = vpack.c.b16 %v881, %v880
        %v909 = vpack.c.b16 %v883, %v882
        %v910 = vpack.c.b16 %v885, %v884
        %v911 = vpack.c.b16 %v887, %v886
        %936 = vmatpush.bf16.msra.mxu0 %v895
        %937 = vmatpush.bf16.msra.mxu0 %v894
        %938 = vmatpush.bf16.msra.mxu0 %v893
        %939 = vmatpush.bf16.msra.mxu0 %v892
        %940 = vmatpush.bf16.msra.mxu0 %v891
        %941 = vmatpush.bf16.msra.mxu0 %v890
        %942 = vmatpush.bf16.msra.mxu0 %v889
        %943 = vmatpush.bf16.msra.mxu0 %v888
        %944 = vmatmul.bf16.gmra.mxu0 %v728
        %v945 = vpop.f32.mrf.mxu0
        %v946 = vadd.f32 %v790, %v945
        %v947 = vpop.f32.mrf.mxu0
        %v948 = vadd.f32 %v790, %v947
        %949 = vdwg.mxu0
        %950 = vmatpush.bf16.msra.mxu0 %v903
        %951 = vmatpush.bf16.msra.mxu0 %v902
        %952 = vmatpush.bf16.msra.mxu0 %v901
        %953 = vmatpush.bf16.msra.mxu0 %v900
        %954 = vmatpush.bf16.msra.mxu0 %v899
        %955 = vmatpush.bf16.msra.mxu0 %v898
        %956 = vmatpush.bf16.msra.mxu0 %v897
        %957 = vmatpush.bf16.msra.mxu0 %v896
        %958 = vmatmul.bf16.gmra.mxu0 %v736
        %v959 = vpop.f32.mrf.mxu0
        %v960 = vadd.f32 %v946, %v959
        %v961 = vpop.f32.mrf.mxu0
        %v962 = vadd.f32 %v948, %v961
        %963 = vdwg.mxu0
        %964 = vmatpush.bf16.msra.mxu0 %v911
        %965 = vmatpush.bf16.msra.mxu0 %v910
        %966 = vmatpush.bf16.msra.mxu0 %v909
        %967 = vmatpush.bf16.msra.mxu0 %v908
        %968 = vmatpush.bf16.msra.mxu0 %v907
        %969 = vmatpush.bf16.msra.mxu0 %v906
        %970 = vmatpush.bf16.msra.mxu0 %v905
        %971 = vmatpush.bf16.msra.mxu0 %v904
        %972 = vmatmul.bf16.gmra.mxu0 %v738
        %v973 = vpop.f32.mrf.mxu0
        %v974 = vadd.f32 %v960, %v973
        %v975 = vpop.f32.mrf.mxu0
        %v976 = vadd.f32 %v962, %v975
        %977 = vdwg.mxu0
        %v978 = vmax.f32 %v974, 0.0
        %v979 = vmax.f32 %v976, 0.0
        %vm982 = vcmask 1046528
        %v983 = vrot.slane %v460, 1
        %v984 = vrot.slane %v461, 1
        %v985 = vsel %vm982, %v983, %v984
        %v988 = vmul.f32 %v978, %v985
        %v989 = vmul.f32 %v979, %v984
        %v990 = vpack.c.bf16 %v988, %v988
        %v991 = vpack.c.bf16 %v989, %v989
        %v994 = vunpack.c.l.b16 %v990
        %v995 = vunpack.c.l.b16 %v991
        %v996 = vpack.c.b16 %v995, %v994
        %v999 = vshrl.u32 %v996, 16
        %v1001 = vshll.u32 %v996, 16
        %v1003 = vrot.slane %v1001, 1
        %v1004 = vor.u32 %v999, %v1003
        %v1006 = vrot.slane %v996, 1
        %v1008 = vld [vmem:[#allocation10] sm:$0xff]
        %v1009 = vld [vmem:[#allocation10 + $0x8] sm:$0xff]
        %v1010 = vld [vmem:[#allocation10 + $0x10] sm:$0xff]
        %v1011 = vld [vmem:[#allocation10 + $0x18] sm:$0xff]
        %v1012 = vld [vmem:[#allocation10 + $0x20] sm:$0xff]
        %v1013 = vld [vmem:[#allocation10 + $0x28] sm:$0xff]
        %v1014 = vld [vmem:[#allocation10 + $0x30] sm:$0xff]
        %v1015 = vld [vmem:[#allocation10 + $0x38] sm:$0xff]
        %v1016 = vld [vmem:[#allocation10 + $0x40] sm:$0xff]
        %v1017 = vld [vmem:[#allocation10 + $0x48] sm:$0xff]
        %v1018 = vld [vmem:[#allocation10 + $0x50] sm:$0xff]
        %v1019 = vld [vmem:[#allocation10 + $0x58] sm:$0xff]
        %v1020 = vld [vmem:[#allocation10 + $0x60] sm:$0xff]
        %v1021 = vld [vmem:[#allocation10 + $0x68] sm:$0xff]
        %v1022 = vld [vmem:[#allocation10 + $0x70] sm:$0xff]
        %v1023 = vld [vmem:[#allocation10 + $0x78] sm:$0xff]
        %v1024 = vld [vmem:[#allocation10 + $0x80] sm:$0xff]
        %v1025 = vld [vmem:[#allocation10 + $0x88] sm:$0xff]
        %v1026 = vld [vmem:[#allocation10 + $0x90] sm:$0xff]
        %v1027 = vld [vmem:[#allocation10 + $0x98] sm:$0xff]
        %v1028 = vld [vmem:[#allocation10 + $0xa0] sm:$0xff]
        %v1029 = vld [vmem:[#allocation10 + $0xa8] sm:$0xff]
        %v1030 = vld [vmem:[#allocation10 + $0xb0] sm:$0xff]
        %v1031 = vld [vmem:[#allocation10 + $0xb8] sm:$0xff]
        %v1032 = vld [vmem:[#allocation10 + $0xc0] sm:$0xff]
        %v1033 = vld [vmem:[#allocation10 + $0xc8] sm:$0xff]
        %v1034 = vld [vmem:[#allocation10 + $0xd0] sm:$0xff]
        %v1035 = vld [vmem:[#allocation10 + $0xd8] sm:$0xff]
        %v1036 = vld [vmem:[#allocation10 + $0xe0] sm:$0xff]
        %v1037 = vld [vmem:[#allocation10 + $0xe8] sm:$0xff]
        %v1038 = vld [vmem:[#allocation10 + $0xf0] sm:$0xff]
        %v1039 = vld [vmem:[#allocation10 + $0xf8] sm:$0xff]
        %v1040 = vld [vmem:[#allocation10 + $0x100] sm:$0xff]
        %v1041 = vld [vmem:[#allocation10 + $0x108] sm:$0xff]
        %v1042 = vld [vmem:[#allocation10 + $0x110] sm:$0xff]
        %v1043 = vld [vmem:[#allocation10 + $0x118] sm:$0xff]
        %v1044 = vld [vmem:[#allocation10 + $0x120] sm:$0xff]
        %v1045 = vld [vmem:[#allocation10 + $0x128] sm:$0xff]
        %v1046 = vld [vmem:[#allocation10 + $0x130] sm:$0xff]
        %v1047 = vld [vmem:[#allocation10 + $0x138] sm:$0xff]
        %v1048 = vld [vmem:[#allocation10 + $0x140] sm:$0xff]
        %v1049 = vld [vmem:[#allocation10 + $0x148] sm:$0xff]
        %v1050 = vld [vmem:[#allocation10 + $0x150] sm:$0xff]
        %v1051 = vld [vmem:[#allocation10 + $0x158] sm:$0xff]
        %v1052 = vld [vmem:[#allocation10 + $0x160] sm:$0xff]
        %v1053 = vld [vmem:[#allocation10 + $0x168] sm:$0xff]
        %v1054 = vld [vmem:[#allocation10 + $0x170] sm:$0xff]
        %v1055 = vld [vmem:[#allocation10 + $0x178] sm:$0xff]
        %v1056 = vld [vmem:[%s6] sm:$0x3]
        %v1058 = vperm.slane %v1056, 0
        %v1059 = vperm.slane %v1056, 1
        %v1110 = vunpack.c.l.b16 %v1008
        %v1111 = vunpack.c.h.b16 %v1008
        %v1112 = vunpack.c.l.b16 %v1009
        %v1113 = vunpack.c.h.b16 %v1009
        %v1114 = vunpack.c.l.b16 %v1010
        %v1115 = vunpack.c.h.b16 %v1010
        %v1116 = vunpack.c.l.b16 %v1011
        %v1117 = vunpack.c.h.b16 %v1011
        %v1118 = vunpack.c.l.b16 %v1012
        %v1119 = vunpack.c.h.b16 %v1012
        %v1120 = vunpack.c.l.b16 %v1013
        %v1121 = vunpack.c.h.b16 %v1013
        %v1122 = vunpack.c.l.b16 %v1014
        %v1123 = vunpack.c.h.b16 %v1014
        %v1124 = vunpack.c.l.b16 %v1015
        %v1125 = vunpack.c.h.b16 %v1015
        %v1126 = vunpack.c.l.b16 %v1016
        %v1127 = vunpack.c.h.b16 %v1016
        %v1128 = vunpack.c.l.b16 %v1017
        %v1129 = vunpack.c.h.b16 %v1017
        %v1130 = vunpack.c.l.b16 %v1018
        %v1131 = vunpack.c.h.b16 %v1018
        %v1132 = vunpack.c.l.b16 %v1019
        %v1133 = vunpack.c.h.b16 %v1019
        %v1134 = vunpack.c.l.b16 %v1020
        %v1135 = vunpack.c.h.b16 %v1020
        %v1136 = vunpack.c.l.b16 %v1021
        %v1137 = vunpack.c.h.b16 %v1021
        %v1138 = vunpack.c.l.b16 %v1022
        %v1139 = vunpack.c.h.b16 %v1022
        %v1140 = vunpack.c.l.b16 %v1023
        %v1141 = vunpack.c.h.b16 %v1023
        %v1142 = vunpack.c.l.b16 %v1024
        %v1143 = vunpack.c.h.b16 %v1024
        %v1144 = vunpack.c.l.b16 %v1025
        %v1145 = vunpack.c.h.b16 %v1025
        %v1146 = vunpack.c.l.b16 %v1026
        %v1147 = vunpack.c.h.b16 %v1026
        %v1148 = vunpack.c.l.b16 %v1027
        %v1149 = vunpack.c.h.b16 %v1027
        %v1150 = vunpack.c.l.b16 %v1028
        %v1151 = vunpack.c.h.b16 %v1028
        %v1152 = vunpack.c.l.b16 %v1029
        %v1153 = vunpack.c.h.b16 %v1029
        %v1154 = vunpack.c.l.b16 %v1030
        %v1155 = vunpack.c.h.b16 %v1030
        %v1156 = vunpack.c.l.b16 %v1031
        %v1157 = vunpack.c.h.b16 %v1031
        %v1158 = vunpack.c.l.b16 %v1032
        %v1159 = vunpack.c.h.b16 %v1032
        %v1160 = vunpack.c.l.b16 %v1033
        %v1161 = vunpack.c.h.b16 %v1033
        %v1162 = vunpack.c.l.b16 %v1034
        %v1163 = vunpack.c.h.b16 %v1034
        %v1164 = vunpack.c.l.b16 %v1035
        %v1165 = vunpack.c.h.b16 %v1035
        %v1166 = vunpack.c.l.b16 %v1036
        %v1167 = vunpack.c.h.b16 %v1036
        %v1168 = vunpack.c.l.b16 %v1037
        %v1169 = vunpack.c.h.b16 %v1037
        %v1170 = vunpack.c.l.b16 %v1038
        %v1171 = vunpack.c.h.b16 %v1038
        %v1172 = vunpack.c.l.b16 %v1039
        %v1173 = vunpack.c.h.b16 %v1039
        %v1174 = vunpack.c.l.b16 %v1040
        %v1175 = vunpack.c.h.b16 %v1040
        %v1176 = vunpack.c.l.b16 %v1041
        %v1177 = vunpack.c.h.b16 %v1041
        %v1178 = vunpack.c.l.b16 %v1042
        %v1179 = vunpack.c.h.b16 %v1042
        %v1180 = vunpack.c.l.b16 %v1043
        %v1181 = vunpack.c.h.b16 %v1043
        %v1182 = vunpack.c.l.b16 %v1044
        %v1183 = vunpack.c.h.b16 %v1044
        %v1184 = vunpack.c.l.b16 %v1045
        %v1185 = vunpack.c.h.b16 %v1045
        %v1186 = vunpack.c.l.b16 %v1046
        %v1187 = vunpack.c.h.b16 %v1046
        %v1188 = vunpack.c.l.b16 %v1047
        %v1189 = vunpack.c.h.b16 %v1047
        %v1190 = vunpack.c.l.b16 %v1048
        %v1191 = vunpack.c.h.b16 %v1048
        %v1192 = vunpack.c.l.b16 %v1049
        %v1193 = vunpack.c.h.b16 %v1049
        %v1194 = vunpack.c.l.b16 %v1050
        %v1195 = vunpack.c.h.b16 %v1050
        %v1196 = vunpack.c.l.b16 %v1051
        %v1197 = vunpack.c.h.b16 %v1051
        %v1198 = vunpack.c.l.b16 %v1052
        %v1199 = vunpack.c.h.b16 %v1052
        %v1200 = vunpack.c.l.b16 %v1053
        %v1201 = vunpack.c.h.b16 %v1053
        %v1202 = vunpack.c.l.b16 %v1054
        %v1203 = vunpack.c.h.b16 %v1054
        %v1204 = vunpack.c.l.b16 %v1055
        %v1205 = vunpack.c.h.b16 %v1055
        %v1206 = vpack.c.b16 %v1112, %v1110
        %v1207 = vpack.c.b16 %v1113, %v1111
        %v1208 = vpack.c.b16 %v1116, %v1114
        %v1209 = vpack.c.b16 %v1117, %v1115
        %v1210 = vpack.c.b16 %v1120, %v1118
        %v1211 = vpack.c.b16 %v1121, %v1119
        %v1212 = vpack.c.b16 %v1124, %v1122
        %v1213 = vpack.c.b16 %v1125, %v1123
        %v1214 = vpack.c.b16 %v1128, %v1126
        %v1215 = vpack.c.b16 %v1129, %v1127
        %v1216 = vpack.c.b16 %v1132, %v1130
        %v1217 = vpack.c.b16 %v1133, %v1131
        %v1218 = vpack.c.b16 %v1136, %v1134
        %v1219 = vpack.c.b16 %v1137, %v1135
        %v1220 = vpack.c.b16 %v1140, %v1138
        %v1221 = vpack.c.b16 %v1141, %v1139
        %v1222 = vpack.c.b16 %v1144, %v1142
        %v1223 = vpack.c.b16 %v1145, %v1143
        %v1224 = vpack.c.b16 %v1148, %v1146
        %v1225 = vpack.c.b16 %v1149, %v1147
        %v1226 = vpack.c.b16 %v1152, %v1150
        %v1227 = vpack.c.b16 %v1153, %v1151
        %v1228 = vpack.c.b16 %v1156, %v1154
        %v1229 = vpack.c.b16 %v1157, %v1155
        %v1230 = vpack.c.b16 %v1160, %v1158
        %v1231 = vpack.c.b16 %v1161, %v1159
        %v1232 = vpack.c.b16 %v1164, %v1162
        %v1233 = vpack.c.b16 %v1165, %v1163
        %v1234 = vpack.c.b16 %v1168, %v1166
        %v1235 = vpack.c.b16 %v1169, %v1167
        %v1236 = vpack.c.b16 %v1172, %v1170
        %v1237 = vpack.c.b16 %v1173, %v1171
        %v1238 = vpack.c.b16 %v1176, %v1174
        %v1239 = vpack.c.b16 %v1177, %v1175
        %v1240 = vpack.c.b16 %v1180, %v1178
        %v1241 = vpack.c.b16 %v1181, %v1179
        %v1242 = vpack.c.b16 %v1184, %v1182
        %v1243 = vpack.c.b16 %v1185, %v1183
        %v1244 = vpack.c.b16 %v1188, %v1186
        %v1245 = vpack.c.b16 %v1189, %v1187
        %v1246 = vpack.c.b16 %v1192, %v1190
        %v1247 = vpack.c.b16 %v1193, %v1191
        %v1248 = vpack.c.b16 %v1196, %v1194
        %v1249 = vpack.c.b16 %v1197, %v1195
        %v1250 = vpack.c.b16 %v1200, %v1198
        %v1251 = vpack.c.b16 %v1201, %v1199
        %v1252 = vpack.c.b16 %v1204, %v1202
        %v1253 = vpack.c.b16 %v1205, %v1203
        %1302 = vmatpush.bf16.msra.mxu0 %v1220
        %1303 = vmatpush.bf16.msra.mxu0 %v1218
        %1304 = vmatpush.bf16.msra.mxu0 %v1216
        %1305 = vmatpush.bf16.msra.mxu0 %v1214
        %1306 = vmatpush.bf16.msra.mxu0 %v1212
        %1307 = vmatpush.bf16.msra.mxu0 %v1210
        %1308 = vmatpush.bf16.msra.mxu0 %v1208
        %1309 = vmatpush.bf16.msra.mxu0 %v1206
        %1310 = vmatmul.bf16.gmra.mxu0 %v996
        %v1311 = vpop.f32.mrf.mxu0
        %v1312 = vadd.f32 %v1058, %v1311
        %v1313 = vpop.f32.mrf.mxu0
        %v1314 = vadd.f32 %v1058, %v1313
        %1315 = vdwg.mxu0
        %1316 = vmatpush.bf16.msra.mxu0 %v1236
        %1317 = vmatpush.bf16.msra.mxu0 %v1234
        %1318 = vmatpush.bf16.msra.mxu0 %v1232
        %1319 = vmatpush.bf16.msra.mxu0 %v1230
        %1320 = vmatpush.bf16.msra.mxu0 %v1228
        %1321 = vmatpush.bf16.msra.mxu0 %v1226
        %1322 = vmatpush.bf16.msra.mxu0 %v1224
        %1323 = vmatpush.bf16.msra.mxu0 %v1222
        %1324 = vmatmul.bf16.gmra.mxu0 %v1004
        %v1325 = vpop.f32.mrf.mxu0
        %v1326 = vadd.f32 %v1312, %v1325
        %v1327 = vpop.f32.mrf.mxu0
        %v1328 = vadd.f32 %v1314, %v1327
        %1329 = vdwg.mxu0
        %1330 = vmatpush.bf16.msra.mxu0 %v1252
        %1331 = vmatpush.bf16.msra.mxu0 %v1250
        %1332 = vmatpush.bf16.msra.mxu0 %v1248
        %1333 = vmatpush.bf16.msra.mxu0 %v1246
        %1334 = vmatpush.bf16.msra.mxu0 %v1244
        %1335 = vmatpush.bf16.msra.mxu0 %v1242
        %1336 = vmatpush.bf16.msra.mxu0 %v1240
        %1337 = vmatpush.bf16.msra.mxu0 %v1238
        %1338 = vmatmul.bf16.gmra.mxu0 %v1006
        %v1339 = vpop.f32.mrf.mxu0
        %v1340 = vadd.f32 %v1326, %v1339
        %v1341 = vpop.f32.mrf.mxu0
        %v1342 = vadd.f32 %v1328, %v1341
        %1343 = vdwg.mxu0
        %1344 = vmatpush.bf16.msra.mxu0 %v1221
        %1345 = vmatpush.bf16.msra.mxu0 %v1219
        %1346 = vmatpush.bf16.msra.mxu0 %v1217
        %1347 = vmatpush.bf16.msra.mxu0 %v1215
        %1348 = vmatpush.bf16.msra.mxu0 %v1213
        %1349 = vmatpush.bf16.msra.mxu0 %v1211
        %1350 = vmatpush.bf16.msra.mxu0 %v1209
        %1351 = vmatpush.bf16.msra.mxu0 %v1207
        %1352 = vmatmul.bf16.gmra.mxu0 %v996
        %v1353 = vpop.f32.mrf.mxu0
        %v1354 = vadd.f32 %v1059, %v1353
        %v1355 = vpop.f32.mrf.mxu0
        %v1356 = vadd.f32 %v1059, %v1355
        %1357 = vdwg.mxu0
        %1358 = vmatpush.bf16.msra.mxu0 %v1237
        %1359 = vmatpush.bf16.msra.mxu0 %v1235
        %1360 = vmatpush.bf16.msra.mxu0 %v1233
        %1361 = vmatpush.bf16.msra.mxu0 %v1231
        %1362 = vmatpush.bf16.msra.mxu0 %v1229
        %1363 = vmatpush.bf16.msra.mxu0 %v1227
        %1364 = vmatpush.bf16.msra.mxu0 %v1225
        %1365 = vmatpush.bf16.msra.mxu0 %v1223
        %1366 = vmatmul.bf16.gmra.mxu0 %v1004
        %v1367 = vpop.f32.mrf.mxu0
        %v1368 = vadd.f32 %v1354, %v1367
        %v1369 = vpop.f32.mrf.mxu0
        %v1370 = vadd.f32 %v1356, %v1369
        %1371 = vdwg.mxu0
        %1372 = vmatpush.bf16.msra.mxu0 %v1253
        %1373 = vmatpush.bf16.msra.mxu0 %v1251
        %1374 = vmatpush.bf16.msra.mxu0 %v1249
        %1375 = vmatpush.bf16.msra.mxu0 %v1247
        %1376 = vmatpush.bf16.msra.mxu0 %v1245
        %1377 = vmatpush.bf16.msra.mxu0 %v1243
        %1378 = vmatpush.bf16.msra.mxu0 %v1241
        %1379 = vmatpush.bf16.msra.mxu0 %v1239
        %1380 = vmatmul.bf16.gmra.mxu0 %v1006
        %v1381 = vpop.f32.mrf.mxu0
        %v1382 = vadd.f32 %v1368, %v1381
        %v1383 = vpop.f32.mrf.mxu0
        %v1384 = vadd.f32 %v1370, %v1383
        %1385 = vdwg.mxu0
        %v1386 = vmax.f32 %v1340, 0.0
        %v1387 = vmax.f32 %v1382, 0.0
        %v1388 = vmax.f32 %v1342, 0.0
        %v1389 = vmax.f32 %v1384, 0.0
        %vm1390 = vcmask 1045504
        %v1391 = vrot.slane %v460, 2
        %v1392 = vrot.slane %v461, 2
        %v1393 = vsel %vm1390, %v1391, %v1392
        %v1396 = vmul.f32 %v1386, %v1393
        %v1397 = vmul.f32 %v1387, %v1393
        %v1398 = vmul.f32 %v1388, %v1392
        %v1399 = vmul.f32 %v1389, %v1392
        %v1400 = vpack.c.bf16 %v1397, %v1396
        %v1401 = vpack.c.bf16 %v1399, %v1398
        %v1403 = vunpack.c.l.b16 %v1400
        %v1404 = vunpack.c.h.b16 %v1400
        %v1405 = vpack.c.b16 %v1403, %v1403
        %v1406 = vpack.c.b16 %v1404, %v1404
        %v1410 = vunpack.c.l.b16 %v1401
        %v1411 = vunpack.c.h.b16 %v1401
        %v1412 = vpack.c.b16 %v1410, %v1403
        %v1413 = vpack.c.b16 %v1411, %v1404
        %v1415 = vshrl.u32 %v1412, 16
        %v1417 = vshll.u32 %v1412, 16
        %v1419 = vrot.slane %v1417, 1
        %v1420 = vor.u32 %v1415, %v1419
        %v1422 = vshrl.u32 %v1413, 16
        %v1424 = vshll.u32 %v1413, 16
        %v1426 = vrot.slane %v1424, 1
        %v1427 = vor.u32 %v1422, %v1426
        %v1430 = vrot.slane %v1412, 1
        %v1431 = vrot.slane %v1413, 1
        %v1434 = vld [vmem:[#allocation12] sm:$0xff]
        %v1435 = vld [vmem:[#allocation12 + $0x8] sm:$0xff]
        %v1436 = vld [vmem:[#allocation12 + $0x10] sm:$0xff]
        %v1437 = vld [vmem:[#allocation12 + $0x18] sm:$0xff]
        %v1438 = vld [vmem:[#allocation12 + $0x20] sm:$0xff]
        %v1439 = vld [vmem:[#allocation12 + $0x28] sm:$0xff]
        %v1440 = vld [vmem:[#allocation12 + $0x30] sm:$0xff]
        %v1441 = vld [vmem:[#allocation12 + $0x38] sm:$0xff]
        %v1442 = vld [vmem:[#allocation12 + $0x40] sm:$0xff]
        %v1443 = vld [vmem:[#allocation12 + $0x48] sm:$0xff]
        %v1444 = vld [vmem:[#allocation12 + $0x50] sm:$0xff]
        %v1445 = vld [vmem:[#allocation12 + $0x58] sm:$0xff]
        %v1446 = vld [vmem:[#allocation12 + $0x60] sm:$0xff]
        %v1447 = vld [vmem:[#allocation12 + $0x68] sm:$0xff]
        %v1448 = vld [vmem:[#allocation12 + $0x70] sm:$0xff]
        %v1449 = vld [vmem:[#allocation12 + $0x78] sm:$0xff]
        %v1450 = vld [vmem:[#allocation12 + $0x80] sm:$0xff]
        %v1451 = vld [vmem:[#allocation12 + $0x88] sm:$0xff]
        %v1452 = vld [vmem:[#allocation12 + $0x90] sm:$0xff]
        %v1453 = vld [vmem:[#allocation12 + $0x98] sm:$0xff]
        %v1454 = vld [vmem:[#allocation12 + $0xa0] sm:$0xff]
        %v1455 = vld [vmem:[#allocation12 + $0xa8] sm:$0xff]
        %v1456 = vld [vmem:[#allocation12 + $0xb0] sm:$0xff]
        %v1457 = vld [vmem:[#allocation12 + $0xb8] sm:$0xff]
        %v1458 = vld [vmem:[#allocation12 + $0xc0] sm:$0xff]
        %v1459 = vld [vmem:[#allocation12 + $0xc8] sm:$0xff]
        %v1460 = vld [vmem:[#allocation12 + $0xd0] sm:$0xff]
        %v1461 = vld [vmem:[#allocation12 + $0xd8] sm:$0xff]
        %v1462 = vld [vmem:[#allocation12 + $0xe0] sm:$0xff]
        %v1463 = vld [vmem:[#allocation12 + $0xe8] sm:$0xff]
        %v1464 = vld [vmem:[#allocation12 + $0xf0] sm:$0xff]
        %v1465 = vld [vmem:[#allocation12 + $0xf8] sm:$0xff]
        %v1466 = vld [vmem:[#allocation12 + $0x100] sm:$0xff]
        %v1467 = vld [vmem:[#allocation12 + $0x108] sm:$0xff]
        %v1468 = vld [vmem:[#allocation12 + $0x110] sm:$0xff]
        %v1469 = vld [vmem:[#allocation12 + $0x118] sm:$0xff]
        %v1470 = vld [vmem:[#allocation12 + $0x120] sm:$0xff]
        %v1471 = vld [vmem:[#allocation12 + $0x128] sm:$0xff]
        %v1472 = vld [vmem:[#allocation12 + $0x130] sm:$0xff]
        %v1473 = vld [vmem:[#allocation12 + $0x138] sm:$0xff]
        %v1474 = vld [vmem:[#allocation12 + $0x140] sm:$0xff]
        %v1475 = vld [vmem:[#allocation12 + $0x148] sm:$0xff]
        %v1476 = vld [vmem:[#allocation12 + $0x150] sm:$0xff]
        %v1477 = vld [vmem:[#allocation12 + $0x158] sm:$0xff]
        %v1478 = vld [vmem:[#allocation12 + $0x160] sm:$0xff]
        %v1479 = vld [vmem:[#allocation12 + $0x168] sm:$0xff]
        %v1480 = vld [vmem:[#allocation12 + $0x170] sm:$0xff]
        %v1481 = vld [vmem:[#allocation12 + $0x178] sm:$0xff]
        %v1482 = vld [vmem:[#allocation12 + $0x180] sm:$0xff]
        %v1483 = vld [vmem:[#allocation12 + $0x188] sm:$0xff]
        %v1484 = vld [vmem:[#allocation12 + $0x190] sm:$0xff]
        %v1485 = vld [vmem:[#allocation12 + $0x198] sm:$0xff]
        %v1486 = vld [vmem:[#allocation12 + $0x1a0] sm:$0xff]
        %v1487 = vld [vmem:[#allocation12 + $0x1a8] sm:$0xff]
        %v1488 = vld [vmem:[#allocation12 + $0x1b0] sm:$0xff]
        %v1489 = vld [vmem:[#allocation12 + $0x1b8] sm:$0xff]
        %v1490 = vld [vmem:[#allocation12 + $0x1c0] sm:$0xff]
        %v1491 = vld [vmem:[#allocation12 + $0x1c8] sm:$0xff]
        %v1492 = vld [vmem:[#allocation12 + $0x1d0] sm:$0xff]
        %v1493 = vld [vmem:[#allocation12 + $0x1d8] sm:$0xff]
        %v1494 = vld [vmem:[#allocation12 + $0x1e0] sm:$0xff]
        %v1495 = vld [vmem:[#allocation12 + $0x1e8] sm:$0xff]
        %v1496 = vld [vmem:[#allocation12 + $0x1f0] sm:$0xff]
        %v1497 = vld [vmem:[#allocation12 + $0x1f8] sm:$0xff]
        %v1498 = vld [vmem:[#allocation12 + $0x200] sm:$0xff]
        %v1499 = vld [vmem:[#allocation12 + $0x208] sm:$0xff]
        %v1500 = vld [vmem:[#allocation12 + $0x210] sm:$0xff]
        %v1501 = vld [vmem:[#allocation12 + $0x218] sm:$0xff]
        %v1502 = vld [vmem:[#allocation12 + $0x220] sm:$0xff]
        %v1503 = vld [vmem:[#allocation12 + $0x228] sm:$0xff]
        %v1504 = vld [vmem:[#allocation12 + $0x230] sm:$0xff]
        %v1505 = vld [vmem:[#allocation12 + $0x238] sm:$0xff]
        %v1506 = vld [vmem:[#allocation12 + $0x240] sm:$0xff]
        %v1507 = vld [vmem:[#allocation12 + $0x248] sm:$0xff]
        %v1508 = vld [vmem:[#allocation12 + $0x250] sm:$0xff]
        %v1509 = vld [vmem:[#allocation12 + $0x258] sm:$0xff]
        %v1510 = vld [vmem:[#allocation12 + $0x260] sm:$0xff]
        %v1511 = vld [vmem:[#allocation12 + $0x268] sm:$0xff]
        %v1512 = vld [vmem:[#allocation12 + $0x270] sm:$0xff]
        %v1513 = vld [vmem:[#allocation12 + $0x278] sm:$0xff]
        %v1514 = vld [vmem:[#allocation12 + $0x280] sm:$0xff]
        %v1515 = vld [vmem:[#allocation12 + $0x288] sm:$0xff]
        %v1516 = vld [vmem:[#allocation12 + $0x290] sm:$0xff]
        %v1517 = vld [vmem:[#allocation12 + $0x298] sm:$0xff]
        %v1518 = vld [vmem:[#allocation12 + $0x2a0] sm:$0xff]
        %v1519 = vld [vmem:[#allocation12 + $0x2a8] sm:$0xff]
        %v1520 = vld [vmem:[#allocation12 + $0x2b0] sm:$0xff]
        %v1521 = vld [vmem:[#allocation12 + $0x2b8] sm:$0xff]
        %v1522 = vld [vmem:[#allocation12 + $0x2c0] sm:$0xff]
        %v1523 = vld [vmem:[#allocation12 + $0x2c8] sm:$0xff]
        %v1524 = vld [vmem:[#allocation12 + $0x2d0] sm:$0xff]
        %v1525 = vld [vmem:[#allocation12 + $0x2d8] sm:$0xff]
        %v1526 = vld [vmem:[#allocation12 + $0x2e0] sm:$0xff]
        %v1527 = vld [vmem:[#allocation12 + $0x2e8] sm:$0xff]
        %v1528 = vld [vmem:[#allocation12 + $0x2f0] sm:$0xff]
        %v1529 = vld [vmem:[#allocation12 + $0x2f8] sm:$0xff]
        %v1530 = vld [vmem:[#allocation12 + $0x300] sm:$0xff]
        %v1531 = vld [vmem:[#allocation12 + $0x308] sm:$0xff]
        %v1532 = vld [vmem:[#allocation12 + $0x310] sm:$0xff]
        %v1533 = vld [vmem:[#allocation12 + $0x318] sm:$0xff]
        %v1534 = vld [vmem:[#allocation12 + $0x320] sm:$0xff]
        %v1535 = vld [vmem:[#allocation12 + $0x328] sm:$0xff]
        %v1536 = vld [vmem:[#allocation12 + $0x330] sm:$0xff]
        %v1537 = vld [vmem:[#allocation12 + $0x338] sm:$0xff]
        %v1538 = vld [vmem:[#allocation12 + $0x340] sm:$0xff]
        %v1539 = vld [vmem:[#allocation12 + $0x348] sm:$0xff]
        %v1540 = vld [vmem:[#allocation12 + $0x350] sm:$0xff]
        %v1541 = vld [vmem:[#allocation12 + $0x358] sm:$0xff]
        %v1542 = vld [vmem:[#allocation12 + $0x360] sm:$0xff]
        %v1543 = vld [vmem:[#allocation12 + $0x368] sm:$0xff]
        %v1544 = vld [vmem:[#allocation12 + $0x370] sm:$0xff]
        %v1545 = vld [vmem:[#allocation12 + $0x378] sm:$0xff]
        %v1546 = vld [vmem:[#allocation12 + $0x380] sm:$0xff]
        %v1547 = vld [vmem:[#allocation12 + $0x388] sm:$0xff]
        %v1548 = vld [vmem:[#allocation12 + $0x390] sm:$0xff]
        %v1549 = vld [vmem:[#allocation12 + $0x398] sm:$0xff]
        %v1550 = vld [vmem:[#allocation12 + $0x3a0] sm:$0xff]
        %v1551 = vld [vmem:[#allocation12 + $0x3a8] sm:$0xff]
        %v1552 = vld [vmem:[#allocation12 + $0x3b0] sm:$0xff]
        %v1553 = vld [vmem:[#allocation12 + $0x3b8] sm:$0xff]
        %v1554 = vld [vmem:[#allocation12 + $0x3c0] sm:$0xff]
        %v1555 = vld [vmem:[#allocation12 + $0x3c8] sm:$0xff]
        %v1556 = vld [vmem:[#allocation12 + $0x3d0] sm:$0xff]
        %v1557 = vld [vmem:[#allocation12 + $0x3d8] sm:$0xff]
        %v1558 = vld [vmem:[#allocation12 + $0x3e0] sm:$0xff]
        %v1559 = vld [vmem:[#allocation12 + $0x3e8] sm:$0xff]
        %v1560 = vld [vmem:[#allocation12 + $0x3f0] sm:$0xff]
        %v1561 = vld [vmem:[#allocation12 + $0x3f8] sm:$0xff]
        %v1562 = vld [vmem:[#allocation12 + $0x400] sm:$0xff]
        %v1563 = vld [vmem:[#allocation12 + $0x408] sm:$0xff]
        %v1564 = vld [vmem:[#allocation12 + $0x410] sm:$0xff]
        %v1565 = vld [vmem:[#allocation12 + $0x418] sm:$0xff]
        %v1566 = vld [vmem:[#allocation12 + $0x420] sm:$0xff]
        %v1567 = vld [vmem:[#allocation12 + $0x428] sm:$0xff]
        %v1568 = vld [vmem:[#allocation12 + $0x430] sm:$0xff]
        %v1569 = vld [vmem:[#allocation12 + $0x438] sm:$0xff]
        %v1570 = vld [vmem:[#allocation12 + $0x440] sm:$0xff]
        %v1571 = vld [vmem:[#allocation12 + $0x448] sm:$0xff]
        %v1572 = vld [vmem:[#allocation12 + $0x450] sm:$0xff]
        %v1573 = vld [vmem:[#allocation12 + $0x458] sm:$0xff]
        %v1574 = vld [vmem:[#allocation12 + $0x460] sm:$0xff]
        %v1575 = vld [vmem:[#allocation12 + $0x468] sm:$0xff]
        %v1576 = vld [vmem:[#allocation12 + $0x470] sm:$0xff]
        %v1577 = vld [vmem:[#allocation12 + $0x478] sm:$0xff]
        %v1578 = vld [vmem:[#allocation12 + $0x480] sm:$0xff]
        %v1579 = vld [vmem:[#allocation12 + $0x488] sm:$0xff]
        %v1580 = vld [vmem:[#allocation12 + $0x490] sm:$0xff]
        %v1581 = vld [vmem:[#allocation12 + $0x498] sm:$0xff]
        %v1582 = vld [vmem:[#allocation12 + $0x4a0] sm:$0xff]
        %v1583 = vld [vmem:[#allocation12 + $0x4a8] sm:$0xff]
        %v1584 = vld [vmem:[#allocation12 + $0x4b0] sm:$0xff]
        %v1585 = vld [vmem:[#allocation12 + $0x4b8] sm:$0xff]
        %v1586 = vld [vmem:[#allocation12 + $0x4c0] sm:$0xff]
        %v1587 = vld [vmem:[#allocation12 + $0x4c8] sm:$0xff]
        %v1588 = vld [vmem:[#allocation12 + $0x4d0] sm:$0xff]
        %v1589 = vld [vmem:[#allocation12 + $0x4d8] sm:$0xff]
        %v1590 = vld [vmem:[#allocation12 + $0x4e0] sm:$0xff]
        %v1591 = vld [vmem:[#allocation12 + $0x4e8] sm:$0xff]
        %v1592 = vld [vmem:[#allocation12 + $0x4f0] sm:$0xff]
        %v1593 = vld [vmem:[#allocation12 + $0x4f8] sm:$0xff]
        %v1594 = vld [vmem:[#allocation12 + $0x500] sm:$0xff]
        %v1595 = vld [vmem:[#allocation12 + $0x508] sm:$0xff]
        %v1596 = vld [vmem:[#allocation12 + $0x510] sm:$0xff]
        %v1597 = vld [vmem:[#allocation12 + $0x518] sm:$0xff]
        %v1598 = vld [vmem:[#allocation12 + $0x520] sm:$0xff]
        %v1599 = vld [vmem:[#allocation12 + $0x528] sm:$0xff]
        %v1600 = vld [vmem:[#allocation12 + $0x530] sm:$0xff]
        %v1601 = vld [vmem:[#allocation12 + $0x538] sm:$0xff]
        %v1602 = vld [vmem:[#allocation12 + $0x540] sm:$0xff]
        %v1603 = vld [vmem:[#allocation12 + $0x548] sm:$0xff]
        %v1604 = vld [vmem:[#allocation12 + $0x550] sm:$0xff]
        %v1605 = vld [vmem:[#allocation12 + $0x558] sm:$0xff]
        %v1606 = vld [vmem:[#allocation12 + $0x560] sm:$0xff]
        %v1607 = vld [vmem:[#allocation12 + $0x568] sm:$0xff]
        %v1608 = vld [vmem:[#allocation12 + $0x570] sm:$0xff]
        %v1609 = vld [vmem:[#allocation12 + $0x578] sm:$0xff]
        %v1610 = vld [vmem:[#allocation12 + $0x580] sm:$0xff]
        %v1611 = vld [vmem:[#allocation12 + $0x588] sm:$0xff]
        %v1612 = vld [vmem:[#allocation12 + $0x590] sm:$0xff]
        %v1613 = vld [vmem:[#allocation12 + $0x598] sm:$0xff]
        %v1614 = vld [vmem:[#allocation12 + $0x5a0] sm:$0xff]
        %v1615 = vld [vmem:[#allocation12 + $0x5a8] sm:$0xff]
        %v1616 = vld [vmem:[#allocation12 + $0x5b0] sm:$0xff]
        %v1617 = vld [vmem:[#allocation12 + $0x5b8] sm:$0xff]
        %v1618 = vld [vmem:[#allocation12 + $0x5c0] sm:$0xff]
        %v1619 = vld [vmem:[#allocation12 + $0x5c8] sm:$0xff]
        %v1620 = vld [vmem:[#allocation12 + $0x5d0] sm:$0xff]
        %v1621 = vld [vmem:[#allocation12 + $0x5d8] sm:$0xff]
        %v1622 = vld [vmem:[#allocation12 + $0x5e0] sm:$0xff]
        %v1623 = vld [vmem:[#allocation12 + $0x5e8] sm:$0xff]
        %v1624 = vld [vmem:[#allocation12 + $0x5f0] sm:$0xff]
        %v1625 = vld [vmem:[#allocation12 + $0x5f8] sm:$0xff]
        %v1626 = vld [vmem:[%s8] sm:$0xf]
        %v1628 = vperm.slane %v1626, 0
        %v1629 = vperm.slane %v1626, 1
        %v1630 = vperm.slane %v1626, 2
        %v1631 = vperm.slane %v1626, 3
        %v1828 = vunpack.c.l.b16 %v1434
        %v1829 = vunpack.c.h.b16 %v1434
        %v1830 = vunpack.c.l.b16 %v1435
        %v1831 = vunpack.c.h.b16 %v1435
        %v1832 = vunpack.c.l.b16 %v1436
        %v1833 = vunpack.c.h.b16 %v1436
        %v1834 = vunpack.c.l.b16 %v1437
        %v1835 = vunpack.c.h.b16 %v1437
        %v1836 = vunpack.c.l.b16 %v1438
        %v1837 = vunpack.c.h.b16 %v1438
        %v1838 = vunpack.c.l.b16 %v1439
        %v1839 = vunpack.c.h.b16 %v1439
        %v1840 = vunpack.c.l.b16 %v1440
        %v1841 = vunpack.c.h.b16 %v1440
        %v1842 = vunpack.c.l.b16 %v1441
        %v1843 = vunpack.c.h.b16 %v1441
        %v1844 = vunpack.c.l.b16 %v1442
        %v1845 = vunpack.c.h.b16 %v1442
        %v1846 = vunpack.c.l.b16 %v1443
        %v1847 = vunpack.c.h.b16 %v1443
        %v1848 = vunpack.c.l.b16 %v1444
        %v1849 = vunpack.c.h.b16 %v1444
        %v1850 = vunpack.c.l.b16 %v1445
        %v1851 = vunpack.c.h.b16 %v1445
        %v1852 = vunpack.c.l.b16 %v1446
        %v1853 = vunpack.c.h.b16 %v1446
        %v1854 = vunpack.c.l.b16 %v1447
        %v1855 = vunpack.c.h.b16 %v1447
        %v1856 = vunpack.c.l.b16 %v1448
        %v1857 = vunpack.c.h.b16 %v1448
        %v1858 = vunpack.c.l.b16 %v1449
        %v1859 = vunpack.c.h.b16 %v1449
        %v1860 = vunpack.c.l.b16 %v1450
        %v1861 = vunpack.c.h.b16 %v1450
        %v1862 = vunpack.c.l.b16 %v1451
        %v1863 = vunpack.c.h.b16 %v1451
        %v1864 = vunpack.c.l.b16 %v1452
        %v1865 = vunpack.c.h.b16 %v1452
        %v1866 = vunpack.c.l.b16 %v1453
        %v1867 = vunpack.c.h.b16 %v1453
        %v1868 = vunpack.c.l.b16 %v1454
        %v1869 = vunpack.c.h.b16 %v1454
        %v1870 = vunpack.c.l.b16 %v1455
        %v1871 = vunpack.c.h.b16 %v1455
        %v1872 = vunpack.c.l.b16 %v1456
        %v1873 = vunpack.c.h.b16 %v1456
        %v1874 = vunpack.c.l.b16 %v1457
        %v1875 = vunpack.c.h.b16 %v1457
        %v1876 = vunpack.c.l.b16 %v1458
        %v1877 = vunpack.c.h.b16 %v1458
        %v1878 = vunpack.c.l.b16 %v1459
        %v1879 = vunpack.c.h.b16 %v1459
        %v1880 = vunpack.c.l.b16 %v1460
        %v1881 = vunpack.c.h.b16 %v1460
        %v1882 = vunpack.c.l.b16 %v1461
        %v1883 = vunpack.c.h.b16 %v1461
        %v1884 = vunpack.c.l.b16 %v1462
        %v1885 = vunpack.c.h.b16 %v1462
        %v1886 = vunpack.c.l.b16 %v1463
        %v1887 = vunpack.c.h.b16 %v1463
        %v1888 = vunpack.c.l.b16 %v1464
        %v1889 = vunpack.c.h.b16 %v1464
        %v1890 = vunpack.c.l.b16 %v1465
        %v1891 = vunpack.c.h.b16 %v1465
        %v1892 = vunpack.c.l.b16 %v1466
        %v1893 = vunpack.c.h.b16 %v1466
        %v1894 = vunpack.c.l.b16 %v1467
        %v1895 = vunpack.c.h.b16 %v1467
        %v1896 = vunpack.c.l.b16 %v1468
        %v1897 = vunpack.c.h.b16 %v1468
        %v1898 = vunpack.c.l.b16 %v1469
        %v1899 = vunpack.c.h.b16 %v1469
        %v1900 = vunpack.c.l.b16 %v1470
        %v1901 = vunpack.c.h.b16 %v1470
        %v1902 = vunpack.c.l.b16 %v1471
        %v1903 = vunpack.c.h.b16 %v1471
        %v1904 = vunpack.c.l.b16 %v1472
        %v1905 = vunpack.c.h.b16 %v1472
        %v1906 = vunpack.c.l.b16 %v1473
        %v1907 = vunpack.c.h.b16 %v1473
        %v1908 = vunpack.c.l.b16 %v1474
        %v1909 = vunpack.c.h.b16 %v1474
        %v1910 = vunpack.c.l.b16 %v1475
        %v1911 = vunpack.c.h.b16 %v1475
        %v1912 = vunpack.c.l.b16 %v1476
        %v1913 = vunpack.c.h.b16 %v1476
        %v1914 = vunpack.c.l.b16 %v1477
        %v1915 = vunpack.c.h.b16 %v1477
        %v1916 = vunpack.c.l.b16 %v1478
        %v1917 = vunpack.c.h.b16 %v1478
        %v1918 = vunpack.c.l.b16 %v1479
        %v1919 = vunpack.c.h.b16 %v1479
        %v1920 = vunpack.c.l.b16 %v1480
        %v1921 = vunpack.c.h.b16 %v1480
        %v1922 = vunpack.c.l.b16 %v1481
        %v1923 = vunpack.c.h.b16 %v1481
        %v1924 = vunpack.c.l.b16 %v1482
        %v1925 = vunpack.c.h.b16 %v1482
        %v1926 = vunpack.c.l.b16 %v1483
        %v1927 = vunpack.c.h.b16 %v1483
        %v1928 = vunpack.c.l.b16 %v1484
        %v1929 = vunpack.c.h.b16 %v1484
        %v1930 = vunpack.c.l.b16 %v1485
        %v1931 = vunpack.c.h.b16 %v1485
        %v1932 = vunpack.c.l.b16 %v1486
        %v1933 = vunpack.c.h.b16 %v1486
        %v1934 = vunpack.c.l.b16 %v1487
        %v1935 = vunpack.c.h.b16 %v1487
        %v1936 = vunpack.c.l.b16 %v1488
        %v1937 = vunpack.c.h.b16 %v1488
        %v1938 = vunpack.c.l.b16 %v1489
        %v1939 = vunpack.c.h.b16 %v1489
        %v1940 = vunpack.c.l.b16 %v1490
        %v1941 = vunpack.c.h.b16 %v1490
        %v1942 = vunpack.c.l.b16 %v1491
        %v1943 = vunpack.c.h.b16 %v1491
        %v1944 = vunpack.c.l.b16 %v1492
        %v1945 = vunpack.c.h.b16 %v1492
        %v1946 = vunpack.c.l.b16 %v1493
        %v1947 = vunpack.c.h.b16 %v1493
        %v1948 = vunpack.c.l.b16 %v1494
        %v1949 = vunpack.c.h.b16 %v1494
        %v1950 = vunpack.c.l.b16 %v1495
        %v1951 = vunpack.c.h.b16 %v1495
        %v1952 = vunpack.c.l.b16 %v1496
        %v1953 = vunpack.c.h.b16 %v1496
        %v1954 = vunpack.c.l.b16 %v1497
        %v1955 = vunpack.c.h.b16 %v1497
        %v1956 = vunpack.c.l.b16 %v1498
        %v1957 = vunpack.c.h.b16 %v1498
        %v1958 = vunpack.c.l.b16 %v1499
        %v1959 = vunpack.c.h.b16 %v1499
        %v1960 = vunpack.c.l.b16 %v1500
        %v1961 = vunpack.c.h.b16 %v1500
        %v1962 = vunpack.c.l.b16 %v1501
        %v1963 = vunpack.c.h.b16 %v1501
        %v1964 = vunpack.c.l.b16 %v1502
        %v1965 = vunpack.c.h.b16 %v1502
        %v1966 = vunpack.c.l.b16 %v1503
        %v1967 = vunpack.c.h.b16 %v1503
        %v1968 = vunpack.c.l.b16 %v1504
        %v1969 = vunpack.c.h.b16 %v1504
        %v1970 = vunpack.c.l.b16 %v1505
        %v1971 = vunpack.c.h.b16 %v1505
        %v1972 = vunpack.c.l.b16 %v1506
        %v1973 = vunpack.c.h.b16 %v1506
        %v1974 = vunpack.c.l.b16 %v1507
        %v1975 = vunpack.c.h.b16 %v1507
        %v1976 = vunpack.c.l.b16 %v1508
        %v1977 = vunpack.c.h.b16 %v1508
        %v1978 = vunpack.c.l.b16 %v1509
        %v1979 = vunpack.c.h.b16 %v1509
        %v1980 = vunpack.c.l.b16 %v1510
        %v1981 = vunpack.c.h.b16 %v1510
        %v1982 = vunpack.c.l.b16 %v1511
        %v1983 = vunpack.c.h.b16 %v1511
        %v1984 = vunpack.c.l.b16 %v1512
        %v1985 = vunpack.c.h.b16 %v1512
        %v1986 = vunpack.c.l.b16 %v1513
        %v1987 = vunpack.c.h.b16 %v1513
        %v1988 = vunpack.c.l.b16 %v1514
        %v1989 = vunpack.c.h.b16 %v1514
        %v1990 = vunpack.c.l.b16 %v1515
        %v1991 = vunpack.c.h.b16 %v1515
        %v1992 = vunpack.c.l.b16 %v1516
        %v1993 = vunpack.c.h.b16 %v1516
        %v1994 = vunpack.c.l.b16 %v1517
        %v1995 = vunpack.c.h.b16 %v1517
        %v1996 = vunpack.c.l.b16 %v1518
        %v1997 = vunpack.c.h.b16 %v1518
        %v1998 = vunpack.c.l.b16 %v1519
        %v1999 = vunpack.c.h.b16 %v1519
        %v2000 = vunpack.c.l.b16 %v1520
        %v2001 = vunpack.c.h.b16 %v1520
        %v2002 = vunpack.c.l.b16 %v1521
        %v2003 = vunpack.c.h.b16 %v1521
        %v2004 = vunpack.c.l.b16 %v1522
        %v2005 = vunpack.c.h.b16 %v1522
        %v2006 = vunpack.c.l.b16 %v1523
        %v2007 = vunpack.c.h.b16 %v1523
        %v2008 = vunpack.c.l.b16 %v1524
        %v2009 = vunpack.c.h.b16 %v1524
        %v2010 = vunpack.c.l.b16 %v1525
        %v2011 = vunpack.c.h.b16 %v1525
        %v2012 = vunpack.c.l.b16 %v1526
        %v2013 = vunpack.c.h.b16 %v1526
        %v2014 = vunpack.c.l.b16 %v1527
        %v2015 = vunpack.c.h.b16 %v1527
        %v2016 = vunpack.c.l.b16 %v1528
        %v2017 = vunpack.c.h.b16 %v1528
        %v2018 = vunpack.c.l.b16 %v1529
        %v2019 = vunpack.c.h.b16 %v1529
        %v2020 = vunpack.c.l.b16 %v1530
        %v2021 = vunpack.c.h.b16 %v1530
        %v2022 = vunpack.c.l.b16 %v1531
        %v2023 = vunpack.c.h.b16 %v1531
        %v2024 = vunpack.c.l.b16 %v1532
        %v2025 = vunpack.c.h.b16 %v1532
        %v2026 = vunpack.c.l.b16 %v1533
        %v2027 = vunpack.c.h.b16 %v1533
        %v2028 = vunpack.c.l.b16 %v1534
        %v2029 = vunpack.c.h.b16 %v1534
        %v2030 = vunpack.c.l.b16 %v1535
        %v2031 = vunpack.c.h.b16 %v1535
        %v2032 = vunpack.c.l.b16 %v1536
        %v2033 = vunpack.c.h.b16 %v1536
        %v2034 = vunpack.c.l.b16 %v1537
        %v2035 = vunpack.c.h.b16 %v1537
        %v2036 = vunpack.c.l.b16 %v1538
        %v2037 = vunpack.c.h.b16 %v1538
        %v2038 = vunpack.c.l.b16 %v1539
        %v2039 = vunpack.c.h.b16 %v1539
        %v2040 = vunpack.c.l.b16 %v1540
        %v2041 = vunpack.c.h.b16 %v1540
        %v2042 = vunpack.c.l.b16 %v1541
        %v2043 = vunpack.c.h.b16 %v1541
        %v2044 = vunpack.c.l.b16 %v1542
        %v2045 = vunpack.c.h.b16 %v1542
        %v2046 = vunpack.c.l.b16 %v1543
        %v2047 = vunpack.c.h.b16 %v1543
        %v2048 = vunpack.c.l.b16 %v1544
        %v2049 = vunpack.c.h.b16 %v1544
        %v2050 = vunpack.c.l.b16 %v1545
        %v2051 = vunpack.c.h.b16 %v1545
        %v2052 = vunpack.c.l.b16 %v1546
        %v2053 = vunpack.c.h.b16 %v1546
        %v2054 = vunpack.c.l.b16 %v1547
        %v2055 = vunpack.c.h.b16 %v1547
        %v2056 = vunpack.c.l.b16 %v1548
        %v2057 = vunpack.c.h.b16 %v1548
        %v2058 = vunpack.c.l.b16 %v1549
        %v2059 = vunpack.c.h.b16 %v1549
        %v2060 = vunpack.c.l.b16 %v1550
        %v2061 = vunpack.c.h.b16 %v1550
        %v2062 = vunpack.c.l.b16 %v1551
        %v2063 = vunpack.c.h.b16 %v1551
        %v2064 = vunpack.c.l.b16 %v1552
        %v2065 = vunpack.c.h.b16 %v1552
        %v2066 = vunpack.c.l.b16 %v1553
        %v2067 = vunpack.c.h.b16 %v1553
        %v2068 = vunpack.c.l.b16 %v1554
        %v2069 = vunpack.c.h.b16 %v1554
        %v2070 = vunpack.c.l.b16 %v1555
        %v2071 = vunpack.c.h.b16 %v1555
        %v2072 = vunpack.c.l.b16 %v1556
        %v2073 = vunpack.c.h.b16 %v1556
        %v2074 = vunpack.c.l.b16 %v1557
        %v2075 = vunpack.c.h.b16 %v1557
        %v2076 = vunpack.c.l.b16 %v1558
        %v2077 = vunpack.c.h.b16 %v1558
        %v2078 = vunpack.c.l.b16 %v1559
        %v2079 = vunpack.c.h.b16 %v1559
        %v2080 = vunpack.c.l.b16 %v1560
        %v2081 = vunpack.c.h.b16 %v1560
        %v2082 = vunpack.c.l.b16 %v1561
        %v2083 = vunpack.c.h.b16 %v1561
        %v2084 = vunpack.c.l.b16 %v1562
        %v2085 = vunpack.c.h.b16 %v1562
        %v2086 = vunpack.c.l.b16 %v1563
        %v2087 = vunpack.c.h.b16 %v1563
        %v2088 = vunpack.c.l.b16 %v1564
        %v2089 = vunpack.c.h.b16 %v1564
        %v2090 = vunpack.c.l.b16 %v1565
        %v2091 = vunpack.c.h.b16 %v1565
        %v2092 = vunpack.c.l.b16 %v1566
        %v2093 = vunpack.c.h.b16 %v1566
        %v2094 = vunpack.c.l.b16 %v1567
        %v2095 = vunpack.c.h.b16 %v1567
        %v2096 = vunpack.c.l.b16 %v1568
        %v2097 = vunpack.c.h.b16 %v1568
        %v2098 = vunpack.c.l.b16 %v1569
        %v2099 = vunpack.c.h.b16 %v1569
        %v2100 = vunpack.c.l.b16 %v1570
        %v2101 = vunpack.c.h.b16 %v1570
        %v2102 = vunpack.c.l.b16 %v1571
        %v2103 = vunpack.c.h.b16 %v1571
        %v2104 = vunpack.c.l.b16 %v1572
        %v2105 = vunpack.c.h.b16 %v1572
        %v2106 = vunpack.c.l.b16 %v1573
        %v2107 = vunpack.c.h.b16 %v1573
        %v2108 = vunpack.c.l.b16 %v1574
        %v2109 = vunpack.c.h.b16 %v1574
        %v2110 = vunpack.c.l.b16 %v1575
        %v2111 = vunpack.c.h.b16 %v1575
        %v2112 = vunpack.c.l.b16 %v1576
        %v2113 = vunpack.c.h.b16 %v1576
        %v2114 = vunpack.c.l.b16 %v1577
        %v2115 = vunpack.c.h.b16 %v1577
        %v2116 = vunpack.c.l.b16 %v1578
        %v2117 = vunpack.c.h.b16 %v1578
        %v2118 = vunpack.c.l.b16 %v1579
        %v2119 = vunpack.c.h.b16 %v1579
        %v2120 = vunpack.c.l.b16 %v1580
        %v2121 = vunpack.c.h.b16 %v1580
        %v2122 = vunpack.c.l.b16 %v1581
        %v2123 = vunpack.c.h.b16 %v1581
        %v2124 = vunpack.c.l.b16 %v1582
        %v2125 = vunpack.c.h.b16 %v1582
        %v2126 = vunpack.c.l.b16 %v1583
        %v2127 = vunpack.c.h.b16 %v1583
        %v2128 = vunpack.c.l.b16 %v1584
        %v2129 = vunpack.c.h.b16 %v1584
        %v2130 = vunpack.c.l.b16 %v1585
        %v2131 = vunpack.c.h.b16 %v1585
        %v2132 = vunpack.c.l.b16 %v1586
        %v2133 = vunpack.c.h.b16 %v1586
        %v2134 = vunpack.c.l.b16 %v1587
        %v2135 = vunpack.c.h.b16 %v1587
        %v2136 = vunpack.c.l.b16 %v1588
        %v2137 = vunpack.c.h.b16 %v1588
        %v2138 = vunpack.c.l.b16 %v1589
        %v2139 = vunpack.c.h.b16 %v1589
        %v2140 = vunpack.c.l.b16 %v1590
        %v2141 = vunpack.c.h.b16 %v1590
        %v2142 = vunpack.c.l.b16 %v1591
        %v2143 = vunpack.c.h.b16 %v1591
        %v2144 = vunpack.c.l.b16 %v1592
        %v2145 = vunpack.c.h.b16 %v1592
        %v2146 = vunpack.c.l.b16 %v1593
        %v2147 = vunpack.c.h.b16 %v1593
        %v2148 = vunpack.c.l.b16 %v1594
        %v2149 = vunpack.c.h.b16 %v1594
        %v2150 = vunpack.c.l.b16 %v1595
        %v2151 = vunpack.c.h.b16 %v1595
        %v2152 = vunpack.c.l.b16 %v1596
        %v2153 = vunpack.c.h.b16 %v1596
        %v2154 = vunpack.c.l.b16 %v1597
        %v2155 = vunpack.c.h.b16 %v1597
        %v2156 = vunpack.c.l.b16 %v1598
        %v2157 = vunpack.c.h.b16 %v1598
        %v2158 = vunpack.c.l.b16 %v1599
        %v2159 = vunpack.c.h.b16 %v1599
        %v2160 = vunpack.c.l.b16 %v1600
        %v2161 = vunpack.c.h.b16 %v1600
        %v2162 = vunpack.c.l.b16 %v1601
        %v2163 = vunpack.c.h.b16 %v1601
        %v2164 = vunpack.c.l.b16 %v1602
        %v2165 = vunpack.c.h.b16 %v1602
        %v2166 = vunpack.c.l.b16 %v1603
        %v2167 = vunpack.c.h.b16 %v1603
        %v2168 = vunpack.c.l.b16 %v1604
        %v2169 = vunpack.c.h.b16 %v1604
        %v2170 = vunpack.c.l.b16 %v1605
        %v2171 = vunpack.c.h.b16 %v1605
        %v2172 = vunpack.c.l.b16 %v1606
        %v2173 = vunpack.c.h.b16 %v1606
        %v2174 = vunpack.c.l.b16 %v1607
        %v2175 = vunpack.c.h.b16 %v1607
        %v2176 = vunpack.c.l.b16 %v1608
        %v2177 = vunpack.c.h.b16 %v1608
        %v2178 = vunpack.c.l.b16 %v1609
        %v2179 = vunpack.c.h.b16 %v1609
        %v2180 = vunpack.c.l.b16 %v1610
        %v2181 = vunpack.c.h.b16 %v1610
        %v2182 = vunpack.c.l.b16 %v1611
        %v2183 = vunpack.c.h.b16 %v1611
        %v2184 = vunpack.c.l.b16 %v1612
        %v2185 = vunpack.c.h.b16 %v1612
        %v2186 = vunpack.c.l.b16 %v1613
        %v2187 = vunpack.c.h.b16 %v1613
        %v2188 = vunpack.c.l.b16 %v1614
        %v2189 = vunpack.c.h.b16 %v1614
        %v2190 = vunpack.c.l.b16 %v1615
        %v2191 = vunpack.c.h.b16 %v1615
        %v2192 = vunpack.c.l.b16 %v1616
        %v2193 = vunpack.c.h.b16 %v1616
        %v2194 = vunpack.c.l.b16 %v1617
        %v2195 = vunpack.c.h.b16 %v1617
        %v2196 = vunpack.c.l.b16 %v1618
        %v2197 = vunpack.c.h.b16 %v1618
        %v2198 = vunpack.c.l.b16 %v1619
        %v2199 = vunpack.c.h.b16 %v1619
        %v2200 = vunpack.c.l.b16 %v1620
        %v2201 = vunpack.c.h.b16 %v1620
        %v2202 = vunpack.c.l.b16 %v1621
        %v2203 = vunpack.c.h.b16 %v1621
        %v2204 = vunpack.c.l.b16 %v1622
        %v2205 = vunpack.c.h.b16 %v1622
        %v2206 = vunpack.c.l.b16 %v1623
        %v2207 = vunpack.c.h.b16 %v1623
        %v2208 = vunpack.c.l.b16 %v1624
        %v2209 = vunpack.c.h.b16 %v1624
        %v2210 = vunpack.c.l.b16 %v1625
        %v2211 = vunpack.c.h.b16 %v1625
        %v2212 = vpack.c.b16 %v1832, %v1828
        %v2213 = vpack.c.b16 %v1833, %v1829
        %v2214 = vpack.c.b16 %v1834, %v1830
        %v2215 = vpack.c.b16 %v1835, %v1831
        %v2216 = vpack.c.b16 %v1840, %v1836
        %v2217 = vpack.c.b16 %v1841, %v1837
        %v2218 = vpack.c.b16 %v1842, %v1838
        %v2219 = vpack.c.b16 %v1843, %v1839
        %v2220 = vpack.c.b16 %v1848, %v1844
        %v2221 = vpack.c.b16 %v1849, %v1845
        %v2222 = vpack.c.b16 %v1850, %v1846
        %v2223 = vpack.c.b16 %v1851, %v1847
        %v2224 = vpack.c.b16 %v1856, %v1852
        %v2225 = vpack.c.b16 %v1857, %v1853
        %v2226 = vpack.c.b16 %v1858, %v1854
        %v2227 = vpack.c.b16 %v1859, %v1855
        %v2228 = vpack.c.b16 %v1864, %v1860
        %v2229 = vpack.c.b16 %v1865, %v1861
        %v2230 = vpack.c.b16 %v1866, %v1862
        %v2231 = vpack.c.b16 %v1867, %v1863
        %v2232 = vpack.c.b16 %v1872, %v1868
        %v2233 = vpack.c.b16 %v1873, %v1869
        %v2234 = vpack.c.b16 %v1874, %v1870
        %v2235 = vpack.c.b16 %v1875, %v1871
        %v2236 = vpack.c.b16 %v1880, %v1876
        %v2237 = vpack.c.b16 %v1881, %v1877
        %v2238 = vpack.c.b16 %v1882, %v1878
        %v2239 = vpack.c.b16 %v1883, %v1879
        %v2240 = vpack.c.b16 %v1888, %v1884
        %v2241 = vpack.c.b16 %v1889, %v1885
        %v2242 = vpack.c.b16 %v1890, %v1886
        %v2243 = vpack.c.b16 %v1891, %v1887
        %v2244 = vpack.c.b16 %v1896, %v1892
        %v2245 = vpack.c.b16 %v1897, %v1893
        %v2246 = vpack.c.b16 %v1898, %v1894
        %v2247 = vpack.c.b16 %v1899, %v1895
        %v2248 = vpack.c.b16 %v1904, %v1900
        %v2249 = vpack.c.b16 %v1905, %v1901
        %v2250 = vpack.c.b16 %v1906, %v1902
        %v2251 = vpack.c.b16 %v1907, %v1903
        %v2252 = vpack.c.b16 %v1912, %v1908
        %v2253 = vpack.c.b16 %v1913, %v1909
        %v2254 = vpack.c.b16 %v1914, %v1910
        %v2255 = vpack.c.b16 %v1915, %v1911
        %v2256 = vpack.c.b16 %v1920, %v1916
        %v2257 = vpack.c.b16 %v1921, %v1917
        %v2258 = vpack.c.b16 %v1922, %v1918
        %v2259 = vpack.c.b16 %v1923, %v1919
        %v2260 = vpack.c.b16 %v1928, %v1924
        %v2261 = vpack.c.b16 %v1929, %v1925
        %v2262 = vpack.c.b16 %v1930, %v1926
        %v2263 = vpack.c.b16 %v1931, %v1927
        %v2264 = vpack.c.b16 %v1936, %v1932
        %v2265 = vpack.c.b16 %v1937, %v1933
        %v2266 = vpack.c.b16 %v1938, %v1934
        %v2267 = vpack.c.b16 %v1939, %v1935
        %v2268 = vpack.c.b16 %v1944, %v1940
        %v2269 = vpack.c.b16 %v1945, %v1941
        %v2270 = vpack.c.b16 %v1946, %v1942
        %v2271 = vpack.c.b16 %v1947, %v1943
        %v2272 = vpack.c.b16 %v1952, %v1948
        %v2273 = vpack.c.b16 %v1953, %v1949
        %v2274 = vpack.c.b16 %v1954, %v1950
        %v2275 = vpack.c.b16 %v1955, %v1951
        %v2276 = vpack.c.b16 %v1960, %v1956
        %v2277 = vpack.c.b16 %v1961, %v1957
        %v2278 = vpack.c.b16 %v1962, %v1958
        %v2279 = vpack.c.b16 %v1963, %v1959
        %v2280 = vpack.c.b16 %v1968, %v1964
        %v2281 = vpack.c.b16 %v1969, %v1965
        %v2282 = vpack.c.b16 %v1970, %v1966
        %v2283 = vpack.c.b16 %v1971, %v1967
        %v2284 = vpack.c.b16 %v1976, %v1972
        %v2285 = vpack.c.b16 %v1977, %v1973
        %v2286 = vpack.c.b16 %v1978, %v1974
        %v2287 = vpack.c.b16 %v1979, %v1975
        %v2288 = vpack.c.b16 %v1984, %v1980
        %v2289 = vpack.c.b16 %v1985, %v1981
        %v2290 = vpack.c.b16 %v1986, %v1982
        %v2291 = vpack.c.b16 %v1987, %v1983
        %v2292 = vpack.c.b16 %v1992, %v1988
        %v2293 = vpack.c.b16 %v1993, %v1989
        %v2294 = vpack.c.b16 %v1994, %v1990
        %v2295 = vpack.c.b16 %v1995, %v1991
        %v2296 = vpack.c.b16 %v2000, %v1996
        %v2297 = vpack.c.b16 %v2001, %v1997
        %v2298 = vpack.c.b16 %v2002, %v1998
        %v2299 = vpack.c.b16 %v2003, %v1999
        %v2300 = vpack.c.b16 %v2008, %v2004
        %v2301 = vpack.c.b16 %v2009, %v2005
        %v2302 = vpack.c.b16 %v2010, %v2006
        %v2303 = vpack.c.b16 %v2011, %v2007
        %v2304 = vpack.c.b16 %v2016, %v2012
        %v2305 = vpack.c.b16 %v2017, %v2013
        %v2306 = vpack.c.b16 %v2018, %v2014
        %v2307 = vpack.c.b16 %v2019, %v2015
        %v2308 = vpack.c.b16 %v2024, %v2020
        %v2309 = vpack.c.b16 %v2025, %v2021
        %v2310 = vpack.c.b16 %v2026, %v2022
        %v2311 = vpack.c.b16 %v2027, %v2023
        %v2312 = vpack.c.b16 %v2032, %v2028
        %v2313 = vpack.c.b16 %v2033, %v2029
        %v2314 = vpack.c.b16 %v2034, %v2030
        %v2315 = vpack.c.b16 %v2035, %v2031
        %v2316 = vpack.c.b16 %v2040, %v2036
        %v2317 = vpack.c.b16 %v2041, %v2037
        %v2318 = vpack.c.b16 %v2042, %v2038
        %v2319 = vpack.c.b16 %v2043, %v2039
        %v2320 = vpack.c.b16 %v2048, %v2044
        %v2321 = vpack.c.b16 %v2049, %v2045
        %v2322 = vpack.c.b16 %v2050, %v2046
        %v2323 = vpack.c.b16 %v2051, %v2047
        %v2324 = vpack.c.b16 %v2056, %v2052
        %v2325 = vpack.c.b16 %v2057, %v2053
        %v2326 = vpack.c.b16 %v2058, %v2054
        %v2327 = vpack.c.b16 %v2059, %v2055
        %v2328 = vpack.c.b16 %v2064, %v2060
        %v2329 = vpack.c.b16 %v2065, %v2061
        %v2330 = vpack.c.b16 %v2066, %v2062
        %v2331 = vpack.c.b16 %v2067, %v2063
        %v2332 = vpack.c.b16 %v2072, %v2068
        %v2333 = vpack.c.b16 %v2073, %v2069
        %v2334 = vpack.c.b16 %v2074, %v2070
        %v2335 = vpack.c.b16 %v2075, %v2071
        %v2336 = vpack.c.b16 %v2080, %v2076
        %v2337 = vpack.c.b16 %v2081, %v2077
        %v2338 = vpack.c.b16 %v2082, %v2078
        %v2339 = vpack.c.b16 %v2083, %v2079
        %v2340 = vpack.c.b16 %v2088, %v2084
        %v2341 = vpack.c.b16 %v2089, %v2085
        %v2342 = vpack.c.b16 %v2090, %v2086
        %v2343 = vpack.c.b16 %v2091, %v2087
        %v2344 = vpack.c.b16 %v2096, %v2092
        %v2345 = vpack.c.b16 %v2097, %v2093
        %v2346 = vpack.c.b16 %v2098, %v2094
        %v2347 = vpack.c.b16 %v2099, %v2095
        %v2348 = vpack.c.b16 %v2104, %v2100
        %v2349 = vpack.c.b16 %v2105, %v2101
        %v2350 = vpack.c.b16 %v2106, %v2102
        %v2351 = vpack.c.b16 %v2107, %v2103
        %v2352 = vpack.c.b16 %v2112, %v2108
        %v2353 = vpack.c.b16 %v2113, %v2109
        %v2354 = vpack.c.b16 %v2114, %v2110
        %v2355 = vpack.c.b16 %v2115, %v2111
        %v2356 = vpack.c.b16 %v2120, %v2116
        %v2357 = vpack.c.b16 %v2121, %v2117
        %v2358 = vpack.c.b16 %v2122, %v2118
        %v2359 = vpack.c.b16 %v2123, %v2119
        %v2360 = vpack.c.b16 %v2128, %v2124
        %v2361 = vpack.c.b16 %v2129, %v2125
        %v2362 = vpack.c.b16 %v2130, %v2126
        %v2363 = vpack.c.b16 %v2131, %v2127
        %v2364 = vpack.c.b16 %v2136, %v2132
        %v2365 = vpack.c.b16 %v2137, %v2133
        %v2366 = vpack.c.b16 %v2138, %v2134
        %v2367 = vpack.c.b16 %v2139, %v2135
        %v2368 = vpack.c.b16 %v2144, %v2140
        %v2369 = vpack.c.b16 %v2145, %v2141
        %v2370 = vpack.c.b16 %v2146, %v2142
        %v2371 = vpack.c.b16 %v2147, %v2143
        %v2372 = vpack.c.b16 %v2152, %v2148
        %v2373 = vpack.c.b16 %v2153, %v2149
        %v2374 = vpack.c.b16 %v2154, %v2150
        %v2375 = vpack.c.b16 %v2155, %v2151
        %v2376 = vpack.c.b16 %v2160, %v2156
        %v2377 = vpack.c.b16 %v2161, %v2157
        %v2378 = vpack.c.b16 %v2162, %v2158
        %v2379 = vpack.c.b16 %v2163, %v2159
        %v2380 = vpack.c.b16 %v2168, %v2164
        %v2381 = vpack.c.b16 %v2169, %v2165
        %v2382 = vpack.c.b16 %v2170, %v2166
        %v2383 = vpack.c.b16 %v2171, %v2167
        %v2384 = vpack.c.b16 %v2176, %v2172
        %v2385 = vpack.c.b16 %v2177, %v2173
        %v2386 = vpack.c.b16 %v2178, %v2174
        %v2387 = vpack.c.b16 %v2179, %v2175
        %v2388 = vpack.c.b16 %v2184, %v2180
        %v2389 = vpack.c.b16 %v2185, %v2181
        %v2390 = vpack.c.b16 %v2186, %v2182
        %v2391 = vpack.c.b16 %v2187, %v2183
        %v2392 = vpack.c.b16 %v2192, %v2188
        %v2393 = vpack.c.b16 %v2193, %v2189
        %v2394 = vpack.c.b16 %v2194, %v2190
        %v2395 = vpack.c.b16 %v2195, %v2191
        %v2396 = vpack.c.b16 %v2200, %v2196
        %v2397 = vpack.c.b16 %v2201, %v2197
        %v2398 = vpack.c.b16 %v2202, %v2198
        %v2399 = vpack.c.b16 %v2203, %v2199
        %v2400 = vpack.c.b16 %v2208, %v2204
        %v2401 = vpack.c.b16 %v2209, %v2205
        %v2402 = vpack.c.b16 %v2210, %v2206
        %v2403 = vpack.c.b16 %v2211, %v2207
        %2596 = vmatpush.bf16.msra.mxu0 %v2240
        %2597 = vmatpush.bf16.msra.mxu0 %v2236
        %2598 = vmatpush.bf16.msra.mxu0 %v2232
        %2599 = vmatpush.bf16.msra.mxu0 %v2228
        %2600 = vmatpush.bf16.msra.mxu0 %v2224
        %2601 = vmatpush.bf16.msra.mxu0 %v2220
        %2602 = vmatpush.bf16.msra.mxu0 %v2216
        %2603 = vmatpush.bf16.msra.mxu0 %v2212
        %2604 = vmatmul.bf16.gmra.mxu0 %v1405
        %v2605 = vpop.f32.mrf.mxu0
        %v2606 = vadd.f32 %v1628, %v2605
        %v2607 = vpop.f32.mrf.mxu0
        %2608 = vdwg.mxu0
        %2609 = vmatpush.bf16.msra.mxu0 %v2272
        %2610 = vmatpush.bf16.msra.mxu0 %v2268
        %2611 = vmatpush.bf16.msra.mxu0 %v2264
        %2612 = vmatpush.bf16.msra.mxu0 %v2260
        %2613 = vmatpush.bf16.msra.mxu0 %v2256
        %2614 = vmatpush.bf16.msra.mxu0 %v2252
        %2615 = vmatpush.bf16.msra.mxu0 %v2248
        %2616 = vmatpush.bf16.msra.mxu0 %v2244
        %2617 = vmatmul.bf16.gmra.mxu0 %v1406
        %v2618 = vpop.f32.mrf.mxu0
        %v2619 = vadd.f32 %v2606, %v2618
        %v2620 = vpop.f32.mrf.mxu0
        %2621 = vdwg.mxu0
        %2622 = vmatpush.bf16.msra.mxu0 %v2304
        %2623 = vmatpush.bf16.msra.mxu0 %v2300
        %2624 = vmatpush.bf16.msra.mxu0 %v2296
        %2625 = vmatpush.bf16.msra.mxu0 %v2292
        %2626 = vmatpush.bf16.msra.mxu0 %v2288
        %2627 = vmatpush.bf16.msra.mxu0 %v2284
        %2628 = vmatpush.bf16.msra.mxu0 %v2280
        %2629 = vmatpush.bf16.msra.mxu0 %v2276
        %2630 = vmatmul.bf16.gmra.mxu0 %v1420
        %v2631 = vpop.f32.mrf.mxu0
        %v2632 = vadd.f32 %v2619, %v2631
        %v2633 = vpop.f32.mrf.mxu0
        %2634 = vdwg.mxu0
        %2635 = vmatpush.bf16.msra.mxu0 %v2336
        %2636 = vmatpush.bf16.msra.mxu0 %v2332
        %2637 = vmatpush.bf16.msra.mxu0 %v2328
        %2638 = vmatpush.bf16.msra.mxu0 %v2324
        %2639 = vmatpush.bf16.msra.mxu0 %v2320
        %2640 = vmatpush.bf16.msra.mxu0 %v2316
        %2641 = vmatpush.bf16.msra.mxu0 %v2312
        %2642 = vmatpush.bf16.msra.mxu0 %v2308
        %2643 = vmatmul.bf16.gmra.mxu0 %v1427
        %v2644 = vpop.f32.mrf.mxu0
        %v2645 = vadd.f32 %v2632, %v2644
        %v2646 = vpop.f32.mrf.mxu0
        %2647 = vdwg.mxu0
        %2648 = vmatpush.bf16.msra.mxu0 %v2368
        %2649 = vmatpush.bf16.msra.mxu0 %v2364
        %2650 = vmatpush.bf16.msra.mxu0 %v2360
        %2651 = vmatpush.bf16.msra.mxu0 %v2356
        %2652 = vmatpush.bf16.msra.mxu0 %v2352
        %2653 = vmatpush.bf16.msra.mxu0 %v2348
        %2654 = vmatpush.bf16.msra.mxu0 %v2344
        %2655 = vmatpush.bf16.msra.mxu0 %v2340
        %2656 = vmatmul.bf16.gmra.mxu0 %v1430
        %v2657 = vpop.f32.mrf.mxu0
        %v2658 = vadd.f32 %v2645, %v2657
        %v2659 = vpop.f32.mrf.mxu0
        %2660 = vdwg.mxu0
        %2661 = vmatpush.bf16.msra.mxu0 %v2400
        %2662 = vmatpush.bf16.msra.mxu0 %v2396
        %2663 = vmatpush.bf16.msra.mxu0 %v2392
        %2664 = vmatpush.bf16.msra.mxu0 %v2388
        %2665 = vmatpush.bf16.msra.mxu0 %v2384
        %2666 = vmatpush.bf16.msra.mxu0 %v2380
        %2667 = vmatpush.bf16.msra.mxu0 %v2376
        %2668 = vmatpush.bf16.msra.mxu0 %v2372
        %2669 = vmatmul.bf16.gmra.mxu0 %v1431
        %v2670 = vpop.f32.mrf.mxu0
        %v2671 = vadd.f32 %v2658, %v2670
        %v2672 = vpop.f32.mrf.mxu0
        %2673 = vdwg.mxu0
        %2674 = vmatpush.bf16.msra.mxu0 %v2241
        %2675 = vmatpush.bf16.msra.mxu0 %v2237
        %2676 = vmatpush.bf16.msra.mxu0 %v2233
        %2677 = vmatpush.bf16.msra.mxu0 %v2229
        %2678 = vmatpush.bf16.msra.mxu0 %v2225
        %2679 = vmatpush.bf16.msra.mxu0 %v2221
        %2680 = vmatpush.bf16.msra.mxu0 %v2217
        %2681 = vmatpush.bf16.msra.mxu0 %v2213
        %2682 = vmatmul.bf16.gmra.mxu0 %v1405
        %v2683 = vpop.f32.mrf.mxu0
        %v2684 = vadd.f32 %v1629, %v2683
        %v2685 = vpop.f32.mrf.mxu0
        %2686 = vdwg.mxu0
        %2687 = vmatpush.bf16.msra.mxu0 %v2273
        %2688 = vmatpush.bf16.msra.mxu0 %v2269
        %2689 = vmatpush.bf16.msra.mxu0 %v2265
        %2690 = vmatpush.bf16.msra.mxu0 %v2261
        %2691 = vmatpush.bf16.msra.mxu0 %v2257
        %2692 = vmatpush.bf16.msra.mxu0 %v2253
        %2693 = vmatpush.bf16.msra.mxu0 %v2249
        %2694 = vmatpush.bf16.msra.mxu0 %v2245
        %2695 = vmatmul.bf16.gmra.mxu0 %v1406
        %v2696 = vpop.f32.mrf.mxu0
        %v2697 = vadd.f32 %v2684, %v2696
        %v2698 = vpop.f32.mrf.mxu0
        %2699 = vdwg.mxu0
        %2700 = vmatpush.bf16.msra.mxu0 %v2305
        %2701 = vmatpush.bf16.msra.mxu0 %v2301
        %2702 = vmatpush.bf16.msra.mxu0 %v2297
        %2703 = vmatpush.bf16.msra.mxu0 %v2293
        %2704 = vmatpush.bf16.msra.mxu0 %v2289
        %2705 = vmatpush.bf16.msra.mxu0 %v2285
        %2706 = vmatpush.bf16.msra.mxu0 %v2281
        %2707 = vmatpush.bf16.msra.mxu0 %v2277
        %2708 = vmatmul.bf16.gmra.mxu0 %v1420
        %v2709 = vpop.f32.mrf.mxu0
        %v2710 = vadd.f32 %v2697, %v2709
        %v2711 = vpop.f32.mrf.mxu0
        %2712 = vdwg.mxu0
        %2713 = vmatpush.bf16.msra.mxu0 %v2337
        %2714 = vmatpush.bf16.msra.mxu0 %v2333
        %2715 = vmatpush.bf16.msra.mxu0 %v2329
        %2716 = vmatpush.bf16.msra.mxu0 %v2325
        %2717 = vmatpush.bf16.msra.mxu0 %v2321
        %2718 = vmatpush.bf16.msra.mxu0 %v2317
        %2719 = vmatpush.bf16.msra.mxu0 %v2313
        %2720 = vmatpush.bf16.msra.mxu0 %v2309
        %2721 = vmatmul.bf16.gmra.mxu0 %v1427
        %v2722 = vpop.f32.mrf.mxu0
        %v2723 = vadd.f32 %v2710, %v2722
        %v2724 = vpop.f32.mrf.mxu0
        %2725 = vdwg.mxu0
        %2726 = vmatpush.bf16.msra.mxu0 %v2369
        %2727 = vmatpush.bf16.msra.mxu0 %v2365
        %2728 = vmatpush.bf16.msra.mxu0 %v2361
        %2729 = vmatpush.bf16.msra.mxu0 %v2357
        %2730 = vmatpush.bf16.msra.mxu0 %v2353
        %2731 = vmatpush.bf16.msra.mxu0 %v2349
        %2732 = vmatpush.bf16.msra.mxu0 %v2345
        %2733 = vmatpush.bf16.msra.mxu0 %v2341
        %2734 = vmatmul.bf16.gmra.mxu0 %v1430
        %v2735 = vpop.f32.mrf.mxu0
        %v2736 = vadd.f32 %v2723, %v2735
        %v2737 = vpop.f32.mrf.mxu0
        %2738 = vdwg.mxu0
        %2739 = vmatpush.bf16.msra.mxu0 %v2401
        %2740 = vmatpush.bf16.msra.mxu0 %v2397
        %2741 = vmatpush.bf16.msra.mxu0 %v2393
        %2742 = vmatpush.bf16.msra.mxu0 %v2389
        %2743 = vmatpush.bf16.msra.mxu0 %v2385
        %2744 = vmatpush.bf16.msra.mxu0 %v2381
        %2745 = vmatpush.bf16.msra.mxu0 %v2377
        %2746 = vmatpush.bf16.msra.mxu0 %v2373
        %2747 = vmatmul.bf16.gmra.mxu0 %v1431
        %v2748 = vpop.f32.mrf.mxu0
        %v2749 = vadd.f32 %v2736, %v2748
        %v2750 = vpop.f32.mrf.mxu0
        %2751 = vdwg.mxu0
        %2752 = vmatpush.bf16.msra.mxu0 %v2242
        %2753 = vmatpush.bf16.msra.mxu0 %v2238
        %2754 = vmatpush.bf16.msra.mxu0 %v2234
        %2755 = vmatpush.bf16.msra.mxu0 %v2230
        %2756 = vmatpush.bf16.msra.mxu0 %v2226
        %2757 = vmatpush.bf16.msra.mxu0 %v2222
        %2758 = vmatpush.bf16.msra.mxu0 %v2218
        %2759 = vmatpush.bf16.msra.mxu0 %v2214
        %2760 = vmatmul.bf16.gmra.mxu0 %v1405
        %v2761 = vpop.f32.mrf.mxu0
        %v2762 = vadd.f32 %v1630, %v2761
        %v2763 = vpop.f32.mrf.mxu0
        %2764 = vdwg.mxu0
        %2765 = vmatpush.bf16.msra.mxu0 %v2274
        %2766 = vmatpush.bf16.msra.mxu0 %v2270
        %2767 = vmatpush.bf16.msra.mxu0 %v2266
        %2768 = vmatpush.bf16.msra.mxu0 %v2262
        %2769 = vmatpush.bf16.msra.mxu0 %v2258
        %2770 = vmatpush.bf16.msra.mxu0 %v2254
        %2771 = vmatpush.bf16.msra.mxu0 %v2250
        %2772 = vmatpush.bf16.msra.mxu0 %v2246
        %2773 = vmatmul.bf16.gmra.mxu0 %v1406
        %v2774 = vpop.f32.mrf.mxu0
        %v2775 = vadd.f32 %v2762, %v2774
        %v2776 = vpop.f32.mrf.mxu0
        %2777 = vdwg.mxu0
        %2778 = vmatpush.bf16.msra.mxu0 %v2306
        %2779 = vmatpush.bf16.msra.mxu0 %v2302
        %2780 = vmatpush.bf16.msra.mxu0 %v2298
        %2781 = vmatpush.bf16.msra.mxu0 %v2294
        %2782 = vmatpush.bf16.msra.mxu0 %v2290
        %2783 = vmatpush.bf16.msra.mxu0 %v2286
        %2784 = vmatpush.bf16.msra.mxu0 %v2282
        %2785 = vmatpush.bf16.msra.mxu0 %v2278
        %2786 = vmatmul.bf16.gmra.mxu0 %v1420
        %v2787 = vpop.f32.mrf.mxu0
        %v2788 = vadd.f32 %v2775, %v2787
        %v2789 = vpop.f32.mrf.mxu0
        %2790 = vdwg.mxu0
        %2791 = vmatpush.bf16.msra.mxu0 %v2338
        %2792 = vmatpush.bf16.msra.mxu0 %v2334
        %2793 = vmatpush.bf16.msra.mxu0 %v2330
        %2794 = vmatpush.bf16.msra.mxu0 %v2326
        %2795 = vmatpush.bf16.msra.mxu0 %v2322
        %2796 = vmatpush.bf16.msra.mxu0 %v2318
        %2797 = vmatpush.bf16.msra.mxu0 %v2314
        %2798 = vmatpush.bf16.msra.mxu0 %v2310
        %2799 = vmatmul.bf16.gmra.mxu0 %v1427
        %v2800 = vpop.f32.mrf.mxu0
        %v2801 = vadd.f32 %v2788, %v2800
        %v2802 = vpop.f32.mrf.mxu0
        %2803 = vdwg.mxu0
        %2804 = vmatpush.bf16.msra.mxu0 %v2370
        %2805 = vmatpush.bf16.msra.mxu0 %v2366
        %2806 = vmatpush.bf16.msra.mxu0 %v2362
        %2807 = vmatpush.bf16.msra.mxu0 %v2358
        %2808 = vmatpush.bf16.msra.mxu0 %v2354
        %2809 = vmatpush.bf16.msra.mxu0 %v2350
        %2810 = vmatpush.bf16.msra.mxu0 %v2346
        %2811 = vmatpush.bf16.msra.mxu0 %v2342
        %2812 = vmatmul.bf16.gmra.mxu0 %v1430
        %v2813 = vpop.f32.mrf.mxu0
        %v2814 = vadd.f32 %v2801, %v2813
        %v2815 = vpop.f32.mrf.mxu0
        %2816 = vdwg.mxu0
        %2817 = vmatpush.bf16.msra.mxu0 %v2402
        %2818 = vmatpush.bf16.msra.mxu0 %v2398
        %2819 = vmatpush.bf16.msra.mxu0 %v2394
        %2820 = vmatpush.bf16.msra.mxu0 %v2390
        %2821 = vmatpush.bf16.msra.mxu0 %v2386
        %2822 = vmatpush.bf16.msra.mxu0 %v2382
        %2823 = vmatpush.bf16.msra.mxu0 %v2378
        %2824 = vmatpush.bf16.msra.mxu0 %v2374
        %2825 = vmatmul.bf16.gmra.mxu0 %v1431
        %v2826 = vpop.f32.mrf.mxu0
        %v2827 = vadd.f32 %v2814, %v2826
        %v2828 = vpop.f32.mrf.mxu0
        %2829 = vdwg.mxu0
        %2830 = vmatpush.bf16.msra.mxu0 %v2243
        %2831 = vmatpush.bf16.msra.mxu0 %v2239
        %2832 = vmatpush.bf16.msra.mxu0 %v2235
        %2833 = vmatpush.bf16.msra.mxu0 %v2231
        %2834 = vmatpush.bf16.msra.mxu0 %v2227
        %2835 = vmatpush.bf16.msra.mxu0 %v2223
        %2836 = vmatpush.bf16.msra.mxu0 %v2219
        %2837 = vmatpush.bf16.msra.mxu0 %v2215
        %2838 = vmatmul.bf16.gmra.mxu0 %v1405
        %v2839 = vpop.f32.mrf.mxu0
        %v2840 = vadd.f32 %v1631, %v2839
        %v2841 = vpop.f32.mrf.mxu0
        %2842 = vdwg.mxu0
        %2843 = vmatpush.bf16.msra.mxu0 %v2275
        %2844 = vmatpush.bf16.msra.mxu0 %v2271
        %2845 = vmatpush.bf16.msra.mxu0 %v2267
        %2846 = vmatpush.bf16.msra.mxu0 %v2263
        %2847 = vmatpush.bf16.msra.mxu0 %v2259
        %2848 = vmatpush.bf16.msra.mxu0 %v2255
        %2849 = vmatpush.bf16.msra.mxu0 %v2251
        %2850 = vmatpush.bf16.msra.mxu0 %v2247
        %2851 = vmatmul.bf16.gmra.mxu0 %v1406
        %v2852 = vpop.f32.mrf.mxu0
        %v2853 = vadd.f32 %v2840, %v2852
        %v2854 = vpop.f32.mrf.mxu0
        %2855 = vdwg.mxu0
        %2856 = vmatpush.bf16.msra.mxu0 %v2307
        %2857 = vmatpush.bf16.msra.mxu0 %v2303
        %2858 = vmatpush.bf16.msra.mxu0 %v2299
        %2859 = vmatpush.bf16.msra.mxu0 %v2295
        %2860 = vmatpush.bf16.msra.mxu0 %v2291
        %2861 = vmatpush.bf16.msra.mxu0 %v2287
        %2862 = vmatpush.bf16.msra.mxu0 %v2283
        %2863 = vmatpush.bf16.msra.mxu0 %v2279
        %2864 = vmatmul.bf16.gmra.mxu0 %v1420
        %v2865 = vpop.f32.mrf.mxu0
        %v2866 = vadd.f32 %v2853, %v2865
        %v2867 = vpop.f32.mrf.mxu0
        %2868 = vdwg.mxu0
        %2869 = vmatpush.bf16.msra.mxu0 %v2339
        %2870 = vmatpush.bf16.msra.mxu0 %v2335
        %2871 = vmatpush.bf16.msra.mxu0 %v2331
        %2872 = vmatpush.bf16.msra.mxu0 %v2327
        %2873 = vmatpush.bf16.msra.mxu0 %v2323
        %2874 = vmatpush.bf16.msra.mxu0 %v2319
        %2875 = vmatpush.bf16.msra.mxu0 %v2315
        %2876 = vmatpush.bf16.msra.mxu0 %v2311
        %2877 = vmatmul.bf16.gmra.mxu0 %v1427
        %v2878 = vpop.f32.mrf.mxu0
        %v2879 = vadd.f32 %v2866, %v2878
        %v2880 = vpop.f32.mrf.mxu0
        %2881 = vdwg.mxu0
        %2882 = vmatpush.bf16.msra.mxu0 %v2371
        %2883 = vmatpush.bf16.msra.mxu0 %v2367
        %2884 = vmatpush.bf16.msra.mxu0 %v2363
        %2885 = vmatpush.bf16.msra.mxu0 %v2359
        %2886 = vmatpush.bf16.msra.mxu0 %v2355
        %2887 = vmatpush.bf16.msra.mxu0 %v2351
        %2888 = vmatpush.bf16.msra.mxu0 %v2347
        %2889 = vmatpush.bf16.msra.mxu0 %v2343
        %2890 = vmatmul.bf16.gmra.mxu0 %v1430
        %v2891 = vpop.f32.mrf.mxu0
        %v2892 = vadd.f32 %v2879, %v2891
        %v2893 = vpop.f32.mrf.mxu0
        %2894 = vdwg.mxu0
        %2895 = vmatpush.bf16.msra.mxu0 %v2403
        %2896 = vmatpush.bf16.msra.mxu0 %v2399
        %2897 = vmatpush.bf16.msra.mxu0 %v2395
        %2898 = vmatpush.bf16.msra.mxu0 %v2391
        %2899 = vmatpush.bf16.msra.mxu0 %v2387
        %2900 = vmatpush.bf16.msra.mxu0 %v2383
        %2901 = vmatpush.bf16.msra.mxu0 %v2379
        %2902 = vmatpush.bf16.msra.mxu0 %v2375
        %2903 = vmatmul.bf16.gmra.mxu0 %v1431
        %v2904 = vpop.f32.mrf.mxu0
        %v2905 = vadd.f32 %v2892, %v2904
        %v2906 = vpop.f32.mrf.mxu0
        %2907 = vdwg.mxu0
        %v2908 = vmax.f32 %v2671, 0.0
        %v2909 = vmax.f32 %v2749, 0.0
        %v2910 = vmax.f32 %v2827, 0.0
        %v2911 = vmax.f32 %v2905, 0.0
        %vm2912 = vcmask 1044480
        %v2913 = vrot.slane %v460, 3
        %v2914 = vrot.slane %v461, 3
        %v2915 = vsel %vm2912, %v2913, %v2914
        %v2917 = vmul.f32 %v2908, %v2915
        %v2918 = vmul.f32 %v2909, %v2915
        %v2919 = vmul.f32 %v2910, %v2915
        %v2920 = vmul.f32 %v2911, %v2915
        // Predicated region
        $region89: #{tpu_custom_call.1} parent=51 // pred_check
          %p2921 = pneg %p380
        $region90: #{tpu_custom_call.1} parent=51 // pred_check_branch
          %2923 = sbr.rel (%p2921) target = $region92
        $region91: #{tpu_custom_call.1} parent=51 // pred_region
          %v2924 = vlaneseq
          %vm2925 = vcmp.ge.s32.totalorder %v2924, 0
          %vm2926 = vcmp.lt.s32.totalorder %v2924, 512
          %vm2927 = vmand %vm2925, %vm2926
          %2928 = vst.msk [vmem:[%s377] sm:$0xf] %vm2927, 0.0
        $region92: #{tpu_custom_call.1} parent=51 // pred_fallthru
          _
        %v2929 = vld [vmem:[%s377] sm:$0xf]
        %v2930 = vrot.slane %v2917, 4
        %v2931 = vadd.f32 %v2917, %v2930
        %v2932 = vrot.slane %v2931, 2
        %v2933 = vadd.f32 %v2931, %v2932
        %v2934 = vrot.slane %v2933, 1
        %v2935 = vadd.f32 %v2933, %v2934
        %v2936 = vrot.slane %v2918, 4
        %v2937 = vadd.f32 %v2918, %v2936
        %v2938 = vrot.slane %v2937, 2
        %v2939 = vadd.f32 %v2937, %v2938
        %v2940 = vrot.slane %v2939, 1
        %v2941 = vadd.f32 %v2939, %v2940
        %v2942 = vrot.slane %v2919, 4
        %v2943 = vadd.f32 %v2919, %v2942
        %v2944 = vrot.slane %v2943, 2
        %v2945 = vadd.f32 %v2943, %v2944
        %v2946 = vrot.slane %v2945, 1
        %v2947 = vadd.f32 %v2945, %v2946
        %v2948 = vrot.slane %v2920, 4
        %v2949 = vadd.f32 %v2920, %v2948
        %v2950 = vrot.slane %v2949, 2
        %v2951 = vadd.f32 %v2949, %v2950
        %v2952 = vrot.slane %v2951, 1
        %v2953 = vadd.f32 %v2951, %v2952
        %v2958 = vrot.slane %v2941, 7
        %v2959 = vrot.slane %v2947, 6
        %v2960 = vrot.slane %v2953, 5
        %vm2961 = vcmask 1040384
        %v2962 = vsel %vm2961, %v2935, %v2958
        %vm2963 = vcmask 1042434
        %v2964 = vsel %vm2963, %v2959, %v2960
        %vm2965 = vcmask 1041408
        %v2966 = vsel %vm2965, %v2962, %v2964
        %v2968 = vadd.f32 %v2929, %v2966
        %v2969 = vlaneseq
        %vm2970 = vcmp.ge.s32.totalorder %v2969, 0
        %vm2971 = vcmp.lt.s32.totalorder %v2969, 512
        %vm2972 = vmand %vm2970, %vm2971
        %2973 = vst.msk [vmem:[%s377] sm:$0xf] %vm2972, %v2968
        %p2974 = scmp.eq.s32.totalorder %s31, 2
        // Predicated region
        $region93: #{tpu_custom_call.1} parent=51 // pred_check
          %p2975 = pneg %p2974
        $region94: #{tpu_custom_call.1} parent=51 // pred_check_branch
          %2977 = sbr.rel (%p2975) target = $region96
        $region95: #{tpu_custom_call.1} parent=51 // pred_region
          %v2978 = vld [vmem:[%s377] sm:$0xf]
          %v2979 = vmul.f32 %v2978, 0.05
          %2980 = vst.msk [vmem:[%s377] sm:$0xf] %vm2972, %v2979
        $region96: #{tpu_custom_call.1} parent=51 // pred_fallthru
          _
        %s2981 = sand.u32 %s214, 1
        %s2982 = scalar_lea.sflag [#allocation6], %s2981
        %s2983 = sand.u32 %s214, 1
        %s2984 = smul.addr %s2983, 4
        %s2985 = scalar_lea.vmem [#allocation13], %s2984
        // Predicated region
        $region97: #{tpu_custom_call.1} parent=51 // pred_check
          %p2986 = pneg %p224
        $region98: #{tpu_custom_call.1} parent=51 // pred_check_branch
          %2988 = sbr.rel (%p2986) target = $region100
        $region99: #{tpu_custom_call.1} parent=51 // pred_region
          %2990 = vsyncadd %s2982, 0
          %s2991 = smul.addr %s30, 4
          %s2992 = scalar_lea.hbm %s9, %s2991
          %s2994 = sshll.u32 %s2985, 4
          %s2995 = int_to_ptr.vmem [resolvable:$true] %s2994
          %s2996 = sshll.u32 %s2992, 4
          %s2997 = int_to_ptr.hbm [resolvable:$true] %s2996
          %2999 = dma.vmem_to_hbm [thread:$0]  %s2995, 64, %s2997, %s2982
        $region100: #{tpu_custom_call.1} parent=51 // pred_fallthru
          _
      $region52: #{tpu_custom_call.1} parent=5 // pred_fallthru
        _
      %p3000 = scmp.le.s32.totalorder 2, %s21
      // Predicated region
      $region101: #{tpu_custom_call.1} parent=5 // pred_check
        %p3001 = pneg %p3000
      $region102: #{tpu_custom_call.1} parent=5 // pred_check_branch
        %3003 = sbr.rel (%p3001) target = $region104
      $region103: #{tpu_custom_call.1} parent=5 // pred_region
        %s3004 = ssub.s32 %s21, 2
        // Predicated region
        $region105: #{tpu_custom_call.1} parent=103 // pred_check
          %p3005 = pneg %p230
        $region106: #{tpu_custom_call.1} parent=103 // pred_check_branch
          %3007 = sbr.rel (%p3005) target = $region108
        $region107: #{tpu_custom_call.1} parent=103 // pred_region
          %s3008 = sand.u32 %s215, 1
          %s3009 = scalar_lea.sflag [#allocation6], %s3008
          %s3010 = sand.u32 %s215, 1
          %s3011 = smul.addr %s3010, 4
          %s3012 = scalar_lea.vmem [#allocation13], %s3011
          %3014 = dma.done %s3009, 64
        $region108: #{tpu_custom_call.1} parent=103 // pred_fallthru
          _
      $region104: #{tpu_custom_call.1} parent=5 // pred_fallthru
        _
    $region6: #{tpu_custom_call.1} parent=1 // loop_footer
      %s25 = sadd.s32 1, %s21
    $region7: #{tpu_custom_call.1} parent=1 // loop_footer_branch
      %20 = sbr.rel target = $region3
    $region8: #{tpu_custom_call.1} parent=1 // loop_exit
      _
    %3015 = vsyncpa [#allocation5], 1
    %s3016 = scalar_lea.sflag [#allocation5], 1
    %3017 = vsyncpa %s3016, 1
    %3018 = vsyncpa [#allocation8], 1
    %3019 = vsyncpa [#allocation11], 1
    %3020 = vsyncpa [#allocation6], 1
    %s3021 = scalar_lea.sflag [#allocation6], 1
    %3022 = vsyncpa %s3021, 1
  %3023 = vsyncmov [#allocation3]
  %s3024 = vpop.sfrf %3023
  %p3025 = scmp.eq.s32.totalorder %s3024, 0
  %p3026 = pneg %p3025
  %3028 = shalt.err (%p3026)
  %s3029 = scalar_lea.sflag [#allocation3], 1
  %3030 = vsyncmov %s3029
  %s3031 = vpop.sfrf %3030
  %p3032 = scmp.eq.s32.totalorder %s3031, 0
  %p3033 = pneg %p3032
  %3035 = shalt.err (%p3033)

</llo_original>
